<compile_context>
chip_gen: v7x
topology: tpu7x:2x2x1
jax: 0.10.0
libtpu: 0.0.40
codegen_flags: <defaults>
</compile_context>

<pallas_src>
import functools

import jax
import jax.numpy as jnp
from jax.experimental import pallas as pl
from jax.experimental.pallas import tpu as pltpu

EPS = 1e-05
_VMEM_LIMIT = 32 * 1024 * 1024   # >= v5e default (16 MiB), == v6e/v7x default


# ---------------------------------------------------------------------------
# Stage B: encoder fat layer as an N-reduction; fat_enc recomputed per tile.
# grid = (P parallel chunks, K tiles per chunk); per-chunk partial sums out.
# ---------------------------------------------------------------------------
def _encoder_reduce_kernel(x_ref, emb_ref, we1_ref, we2_ref, part_ref, acc_ref):
    bf16, f32 = jnp.bfloat16, jnp.float32
    k = pl.program_id(1)

    @pl.when(k == 0)
    def _():
        acc_ref[...] = jnp.zeros_like(acc_ref)

    # Recompute fat_enc tile from the embedding tile (in-kernel bf16 cast).
    emb = emb_ref[...].astype(bf16)                                  # (tn, F)
    h = jnp.tanh(jnp.dot(emb, we1_ref[...], preferred_element_type=f32))
    fat = jnp.tanh(jnp.dot(h.astype(bf16), we2_ref[...],
                           preferred_element_type=f32))              # (tn, H)

    # z_enc partial: (B, tn) @ (tn, H) -> (B, H), f32 accumulation.
    acc_ref[...] += jnp.dot(x_ref[...].astype(bf16), fat.astype(bf16),
                            preferred_element_type=f32)

    @pl.when(k == pl.num_programs(1) - 1)
    def _():
        part_ref[...] = acc_ref[...]


# ---------------------------------------------------------------------------
# Stage C: decoder fat layer; fat_dec^T recomputed per tile from emb^T so the
# big contraction is a plain (B,H)@(H,tn) matmul (no per-tile XLU transpose).
# ---------------------------------------------------------------------------
def _decoder_fat_kernel(embT_ref, w1dT_ref, w2dT_ref, adec_ref, dfp_ref, xhat_ref):
    bf16, f32 = jnp.bfloat16, jnp.float32
    # fat_dec^T = tanh(W2d^T @ tanh(W1d^T @ emb^T)), shape (H, tn).
    hT = jnp.tanh(jnp.dot(w1dT_ref[...], embT_ref[...],
                          preferred_element_type=f32))
    fatT = jnp.tanh(jnp.dot(w2dT_ref[...], hT.astype(bf16),
                            preferred_element_type=f32))
    # x_hat tile: (B, H) @ (H, tn) -> (B, tn), lane-dense output.
    xh = jnp.dot(adec_ref[...], fatT.astype(bf16), preferred_element_type=f32)
    dfp = dfp_ref[...]                     # rows: fat_bias, bn3 scale, bn3 shift
    xh = xh + dfp[0:1, :]
    xh = jnp.maximum(xh, 0.0) * dfp[1:2, :] + dfp[2:3, :]
    xhat_ref[...] = jax.nn.sigmoid(xh)


# ---------------------------------------------------------------------------
# Wrapper
# ---------------------------------------------------------------------------
def _round_up(n, m):
    return ((n + m - 1) // m) * m


def _fold_bn(bn):
    # bn rows: 0=gamma, 1=beta, 2=running_mean, 3=running_var  (shape (4, C))
    sc = bn[0] * jax.lax.rsqrt(bn[3] + EPS)
    sh = bn[1] - bn[2] * sc
    return sc, sh


def vae_forward(emb, x_batch, noise, params, *, max_tile_n=8192):
    """emb: (2, N, F) as in the PyTorch script; x_batch: (B, N); noise: (B, L)."""
    f32, bf16 = jnp.float32, jnp.bfloat16
    emb0 = emb[0]                                  # matches `[...][0]` in forward
    B, N = x_batch.shape
    F = emb0.shape[1]
    H = params["we2"].shape[0]

    # ---- tiling: big lane-dense N tiles, padded tail, 2 parallel chunks ----
    max_tile_n = max(128, (max_tile_n // 128) * 128)
    tn = min(max_tile_n, _round_up(N, 128))
    num_tiles = -(-N // tn)
    P = 2 if num_tiles >= 2 else 1                 # one chunk per v7x TensorCore
    num_tiles = _round_up(num_tiles, P)
    K = num_tiles // P
    Npad = num_tiles * tn

    # ---- folded BN + packed decoder-fat per-channel params (XLA glue) ----
    e1_sc, e1_sh = _fold_bn(params["bn_e1"])
    e2_sc, e2_sh = _fold_bn(params["bn_e2"])
    d1_sc, d1_sh = _fold_bn(params["bn_d1"])
    d2_sc, d2_sh = _fold_bn(params["bn_d2"])
    d3_sc, d3_sh = _fold_bn(params["bn_d3"])
    dfp = jnp.stack([params["dec_fat_b"].reshape(-1).astype(f32),
                     d3_sc, d3_sh])                                   # (3, N)

    # ---- zero-pad N to a tile multiple (zeros are inert in the reduction) ----
    if Npad != N:
        pad = Npad - N
        emb0 = jnp.pad(emb0, ((0, pad), (0, 0)))
        x_pad = jnp.pad(x_batch, ((0, 0), (0, pad)))
        dfp = jnp.pad(dfp, ((0, 0), (0, pad)))
    else:
        x_pad = x_batch

    # Single wrapper pass: transpose + bf16 cast of emb for the decoder kernel.
    embT = emb0.astype(bf16).T                                        # (F, Npad)

    # ---- stage B: z_enc partial sums over N-chunks (fat_enc recomputed) ----
    partials = pl.pallas_call(
        _encoder_reduce_kernel,
        out_shape=jax.ShapeDtypeStruct((P, B, H), f32),
        grid=(P, K),
        in_specs=[
            pl.BlockSpec((B, tn), lambda p, k: (0, p * K + k)),
            pl.BlockSpec((tn, F), lambda p, k: (p * K + k, 0)),
            pl.BlockSpec((F, H), lambda p, k: (0, 0)),
            pl.BlockSpec((H, H), lambda p, k: (0, 0)),
        ],
        out_specs=pl.BlockSpec((None, B, H), lambda p, k: (p, 0, 0)),
        scratch_shapes=[pltpu.VMEM((B, H), f32)],
        compiler_params=pltpu.CompilerParams(
            dimension_semantics=("parallel", "arbitrary"),
            vmem_limit_bytes=_VMEM_LIMIT),
    )(x_pad, emb0, params["we1"].astype(bf16), params["we2"].astype(bf16))

    # ---- tiny encoder/decoder MLPs + reparameterization (plain XLA) ----
    z = partials.sum(axis=0) + params["enc_fat_b"].reshape(1, H)      # (B, H)
    a = jnp.maximum(z, 0.0) * e1_sc + e1_sh
    # TODO(synk): train-mode Dropout(p=0.5) omitted (eval semantics).
    z = jnp.dot(a, params["enc_fc_w"]) + params["enc_fc_b"].reshape(1, -1)
    a = jnp.maximum(z, 0.0) * e2_sc + e2_sh
    mu = jnp.dot(a, params["mean_w"]) + params["mean_b"].reshape(1, -1)
    logvar = jnp.dot(a, params["logvar_w"]) + params["logvar_b"].reshape(1, -1)
    z_lat = mu + noise * jnp.exp(0.5 * logvar)                        # reparam
    z = jnp.dot(z_lat, params["dec_fc_w"]) + params["dec_fc_b"].reshape(1, -1)
    a = jnp.maximum(z, 0.0) * d1_sc + d1_sh
    z = jnp.dot(a, params["dec_fc2_w"]) + params["dec_fc2_b"].reshape(1, -1)
    a_dec = (jnp.maximum(z, 0.0) * d2_sc + d2_sh).astype(bf16)        # (B, H)

    # ---- stage C: decoder fat layer -> xhat (B, N) in lane-dense N-tiles ----
    xhat = pl.pallas_call(
        _decoder_fat_kernel,
        out_shape=jax.ShapeDtypeStruct((B, Npad), f32),
        grid=(num_tiles,),
        in_specs=[
            pl.BlockSpec((F, tn), lambda i: (0, i)),
            pl.BlockSpec((H, F), lambda i: (0, 0)),
            pl.BlockSpec((H, H), lambda i: (0, 0)),
            pl.BlockSpec((B, H), lambda i: (0, 0)),
            pl.BlockSpec((3, tn), lambda i: (0, i)),
        ],
        out_specs=pl.BlockSpec((B, tn), lambda i: (0, i)),
        compiler_params=pltpu.CompilerParams(
            dimension_semantics=("parallel",),
            vmem_limit_bytes=_VMEM_LIMIT),
    )(embT, params["wd1"].T.astype(bf16), params["wd2"].T.astype(bf16),
      a_dec, dfp)

    if Npad != N:
        xhat = xhat[:, :N]
    return xhat, mu, logvar


# ---------------------------------------------------------------------------
# Pure-JAX reference mirroring the kernel's dtype policy (for verification).
# ---------------------------------------------------------------------------
def vae_reference(emb, x_batch, noise, params):
    f32, bf16 = jnp.float32, jnp.bfloat16
    emb0 = emb[0].astype(bf16)

    def aux(w1, w2):
        h = jnp.tanh(jnp.dot(emb0, w1.astype(bf16), preferred_element_type=f32))
        return jnp.tanh(jnp.dot(h.astype(bf16), w2.astype(bf16),
                                preferred_element_type=f32))

    fat_enc = aux(params["we1"], params["we2"])
    fat_dec = aux(params["wd1"], params["wd2"])

    def bn(x, t):
        sc = t[0] * jax.lax.rsqrt(t[3] + EPS)
        return x * sc + (t[1] - t[2] * sc)

    x = x_batch.astype(bf16)
    z = jnp.dot(x, fat_enc.astype(bf16),
                preferred_element_type=f32) + params["enc_fat_b"]
    a = bn(jnp.maximum(z, 0.0), params["bn_e1"])
    z = jnp.dot(a, params["enc_fc_w"]) + params["enc_fc_b"]
    a = bn(jnp.maximum(z, 0.0), params["bn_e2"])
    mu = jnp.dot(a, params["mean_w"]) + params["mean_b"]
    logvar = jnp.dot(a, params["logvar_w"]) + params["logvar_b"]
    z_lat = mu + noise * jnp.exp(0.5 * logvar)
    z = jnp.dot(z_lat, params["dec_fc_w"]) + params["dec_fc_b"]
    a = bn(jnp.maximum(z, 0.0), params["bn_d1"])
    z = jnp.dot(a, params["dec_fc2_w"]) + params["dec_fc2_b"]
    a = bn(jnp.maximum(z, 0.0), params["bn_d2"])
    xh = jnp.dot(a.astype(bf16), fat_dec.astype(bf16).T,
                 preferred_element_type=f32) + params["dec_fat_b"]
    xh = bn(jnp.maximum(xh, 0.0), params["bn_d3"])
    return jax.nn.sigmoid(xh), mu, logvar


# ---------------------------------------------------------------------------
# Parameter construction (same shapes/semantics as the PyTorch module).
# ---------------------------------------------------------------------------
def make_params(key, N, F, H, L):
    ks = jax.random.split(key, 16)
    f32 = jnp.float32

    def rnd(k, shape, scale=0.1):
        return (scale * jax.random.normal(k, shape)).astype(f32)

    def bn_default(C):
        # rows: gamma=1, beta=0, running_mean=0, running_var=1 (PyTorch defaults)
        return jnp.stack([jnp.ones((C,), f32), jnp.zeros((C,), f32),
                          jnp.zeros((C,), f32), jnp.ones((C,), f32)], axis=0)

    return {
        # Feat_emb_net weights, stored (in, out)
        "we1": rnd(ks[0], (F, H)), "we2": rnd(ks[1], (H, H)),
        "wd1": rnd(ks[2], (F, H)), "wd2": rnd(ks[3], (H, H)),
        # encoder
        "enc_fat_b": jnp.zeros((1, H), f32),                  # nn.init.zeros_
        "enc_fc_w": rnd(ks[4], (H, H // 2)), "enc_fc_b": rnd(ks[5], (1, H // 2)),
        "mean_w": rnd(ks[6], (H // 2, L)), "mean_b": jnp.zeros((1, L), f32),
        "logvar_w": rnd(ks[7], (H // 2, L)), "logvar_b": jnp.zeros((1, L), f32),
        # decoder
        "dec_fc_w": rnd(ks[8], (L, H // 2)), "dec_fc_b": rnd(ks[9], (1, H // 2)),
        "dec_fc2_w": rnd(ks[10], (H // 2, H)), "dec_fc2_b": rnd(ks[11], (1, H)),
        "dec_fat_b": jnp.zeros((1, N), f32),                  # nn.init.zeros_
        # BatchNorm params packed as (4, C): gamma, beta, mean, var
        "bn_e1": bn_default(H), "bn_e2": bn_default(H // 2),
        "bn_d1": bn_default(H // 2), "bn_d2": bn_default(H), "bn_d3": bn_default(N),
    }


if __name__ == "__main__":
    # Small, shape-consistent configuration; N=500 with tile=128 exercises the
    # 2-D (parallel, arbitrary) grid, the reduction, and the padded tail.
    B = 8          # batch size
    N = 500        # num_inputs (number of SNP features)
    F = 32         # embedding dim per feature
    H = 64         # n_hidden_u
    L = 16         # latent_dim

    key = jax.random.PRNGKey(0)
    k_emb, k_x, k_noise, k_params = jax.random.split(key, 4)

    emb_base = jax.random.normal(k_emb, (N, F), dtype=jnp.float32)
    emb = jnp.repeat(emb_base[None, :, :], 2, axis=0)              # unsqueeze+repeat
    x_batch = jax.random.uniform(k_x, (B, N), dtype=jnp.float32)
    noise = jax.random.normal(k_noise, (B, L), dtype=jnp.float32)  # randn_like(std)

    params = make_params(k_params, N, F, H, L)

    fwd = jax.jit(functools.partial(vae_forward, max_tile_n=128))
    dec_params, mu, logvar = fwd(emb, x_batch, noise, params)
    jax.block_until_ready((dec_params, mu, logvar))

    assert dec_params.shape == (B, N) and mu.shape == (B, L) and logvar.shape == (B, L)
    assert bool(jnp.all(jnp.isfinite(dec_params)))

    # Verify against a pure-JAX reference with the same dtype policy.
    ref_x, ref_mu, ref_lv = jax.jit(vae_reference)(emb, x_batch, noise, params)
    assert bool(jnp.allclose(dec_params, ref_x, atol=2e-2, rtol=2e-2))
    assert bool(jnp.allclose(mu, ref_mu, atol=2e-2, rtol=2e-2))
    assert bool(jnp.allclose(logvar, ref_lv, atol=2e-2, rtol=2e-2))

    print("KERNEL_OK")
</pallas_src>

<mosaic_0001>
module attributes {stable_mosaic.version = 11 : i64} {
  func.func @_encoder_reduce_kernel(%arg0: i32, %arg1: i32, %arg2: memref<8x128xf32, #tpu.memory_space<vmem>>, %arg3: memref<128x32xf32, #tpu.memory_space<vmem>>, %arg4: memref<32x64xbf16, #tpu.memory_space<vmem>>, %arg5: memref<64x64xbf16, #tpu.memory_space<vmem>>, %arg6: memref<1x8x64xf32, #tpu.memory_space<vmem>>, %arg7: memref<8x64xf32, #tpu.memory_space<vmem>>) attributes {dimension_semantics = [#tpu.dimension_semantics<parallel>, #tpu.dimension_semantics<arbitrary>], iteration_bounds = array<i64: 2, 2>, scalar_prefetch = 0 : i64, scratch_operands = 1 : i64, tpu.core_type = #tpu.core_type<tc>, window_params = [{transform_indices = @transform_0, window_bounds = array<i64: 8, 128>}, {transform_indices = @transform_1, window_bounds = array<i64: 128, 32>}, {pipeline_mode = #tpu.pipeline_mode<synchronous>, transform_indices = @transform_2, window_bounds = array<i64: 32, 64>}, {pipeline_mode = #tpu.pipeline_mode<synchronous>, transform_indices = @transform_3, window_bounds = array<i64: 64, 64>}, {transform_indices = @transform_4, window_bounds = array<i64: 1, 8, 64>}]} {
    %c0_i32 = arith.constant 0 : i32
    %0 = arith.cmpi eq, %arg1, %c0_i32 : i32
    %1 = arith.extui %0 : i1 to i32
    %c0_i32_0 = arith.constant 0 : i32
    %2 = arith.cmpi ne, %1, %c0_i32_0 : i32
    scf.if %2 {
      %cst_15 = arith.constant 0.000000e+00 : f32
      %22 = vector.broadcast %cst_15 : f32 to vector<8x64xf32>
      %c0_16 = arith.constant 0 : index
      %c0_17 = arith.constant 0 : index
      %23 = vector.load %arg7[%c0_16, %c0_17] : memref<8x64xf32, #tpu.memory_space<vmem>>, vector<8x64xf32>
      tpu.vector_store %arg7[%c0_16, %c0_17], %22 {strides = array<i32>} : memref<8x64xf32, #tpu.memory_space<vmem>>, vector<8x64xf32>,
    } else {
    }
    %c0 = arith.constant 0 : index
    %c0_1 = arith.constant 0 : index
    %3 = vector.load %arg3[%c0, %c0_1] : memref<128x32xf32, #tpu.memory_space<vmem>>, vector<128x32xf32>
    %4 = arith.truncf %3 : vector<128x32xf32> to vector<128x32xbf16>
    %c0_2 = arith.constant 0 : index
    %c0_3 = arith.constant 0 : index
    %5 = vector.load %arg4[%c0_2, %c0_3] : memref<32x64xbf16, #tpu.memory_space<vmem>>, vector<32x64xbf16>
    %cst = arith.constant dense<0.000000e+00> : vector<128x64xf32>
    %6 = tpu.matmul %4, %5, %cst {dimension_numbers = #tpu.dot_dimension_numbers<[1], [0], [0], [1], [0, 0, 1, 1], [], []>} : vector<128x32xbf16>, vector<32x64xbf16>, vector<128x64xf32> -> vector<128x64xf32>
    %7 = math.tanh %6 : vector<128x64xf32>
    %8 = arith.truncf %7 : vector<128x64xf32> to vector<128x64xbf16>
    %c0_4 = arith.constant 0 : index
    %c0_5 = arith.constant 0 : index
    %9 = vector.load %arg5[%c0_4, %c0_5] : memref<64x64xbf16, #tpu.memory_space<vmem>>, vector<64x64xbf16>
    %cst_6 = arith.constant dense<0.000000e+00> : vector<128x64xf32>
    %10 = tpu.matmul %8, %9, %cst_6 {dimension_numbers = #tpu.dot_dimension_numbers<[1], [0], [0], [1], [0, 0, 1, 1], [], []>} : vector<128x64xbf16>, vector<64x64xbf16>, vector<128x64xf32> -> vector<128x64xf32>
    %11 = math.tanh %10 : vector<128x64xf32>
    %c0_7 = arith.constant 0 : index
    %c0_8 = arith.constant 0 : index
    %12 = vector.load %arg7[%c0_7, %c0_8] : memref<8x64xf32, #tpu.memory_space<vmem>>, vector<8x64xf32>
    %c0_9 = arith.constant 0 : index
    %c0_10 = arith.constant 0 : index
    %13 = vector.load %arg2[%c0_9, %c0_10] : memref<8x128xf32, #tpu.memory_space<vmem>>, vector<8x128xf32>
    %14 = arith.truncf %13 : vector<8x128xf32> to vector<8x128xbf16>
    %15 = arith.truncf %11 : vector<128x64xf32> to vector<128x64xbf16>
    %cst_11 = arith.constant dense<0.000000e+00> : vector<8x64xf32>
    %16 = tpu.matmul %14, %15, %cst_11 {dimension_numbers = #tpu.dot_dimension_numbers<[1], [0], [0], [1], [0, 0, 1, 1], [], []>} : vector<8x128xbf16>, vector<128x64xbf16>, vector<8x64xf32> -> vector<8x64xf32>
    %17 = arith.addf %12, %16 : vector<8x64xf32>
    %c0_12 = arith.constant 0 : index
    %c0_13 = arith.constant 0 : index
    %18 = vector.load %arg7[%c0_12, %c0_13] : memref<8x64xf32, #tpu.memory_space<vmem>>, vector<8x64xf32>
    tpu.vector_store %arg7[%c0_12, %c0_13], %17 {strides = array<i32>} : memref<8x64xf32, #tpu.memory_space<vmem>>, vector<8x64xf32>,
    %c1_i32 = arith.constant 1 : i32
    %19 = arith.cmpi eq, %arg1, %c1_i32 : i32
    %20 = arith.extui %19 : i1 to i32
    %c0_i32_14 = arith.constant 0 : i32
    %21 = arith.cmpi ne, %20, %c0_i32_14 : i32
    scf.if %21 {
      %c0_15 = arith.constant 0 : index
      %c0_16 = arith.constant 0 : index
      %22 = vector.load %arg7[%c0_15, %c0_16] : memref<8x64xf32, #tpu.memory_space<vmem>>, vector<8x64xf32>
      %c0_17 = arith.constant 0 : index
      %c0_18 = arith.constant 0 : index
      %c0_19 = arith.constant 0 : index
      %23 = vector.load %arg6[%c0_17, %c0_18, %c0_19] : memref<1x8x64xf32, #tpu.memory_space<vmem>>, vector<1x8x64xf32>
      %24 = vector.shape_cast %23 : vector<1x8x64xf32> to vector<8x64xf32>
      %25 = vector.shape_cast %22 : vector<8x64xf32> to vector<1x8x64xf32>
      tpu.vector_store %arg6[%c0_17, %c0_18, %c0_19], %25 {strides = array<i32>} : memref<1x8x64xf32, #tpu.memory_space<vmem>>, vector<1x8x64xf32>,
    } else {
    }
    return
  }
  func.func @transform_0(%arg0: i32, %arg1: i32) -> (i32, i32) {
    %c2_i32 = arith.constant 2 : i32
    %0 = arith.muli %arg0, %c2_i32 : i32
    %1 = arith.addi %0, %arg1 : i32
    %c0_i32 = arith.constant 0 : i32
    %c0_i32_0 = arith.constant 0 : i32
    return %c0_i32, %1 : i32, i32
  }
  func.func @transform_1(%arg0: i32, %arg1: i32) -> (i32, i32) {
    %c2_i32 = arith.constant 2 : i32
    %0 = arith.muli %arg0, %c2_i32 : i32
    %1 = arith.addi %0, %arg1 : i32
    %c0_i32 = arith.constant 0 : i32
    %c0_i32_0 = arith.constant 0 : i32
    return %1, %c0_i32 : i32, i32
  }
  func.func @transform_2(%arg0: i32, %arg1: i32) -> (i32, i32) {
    %c0_i32 = arith.constant 0 : i32
    %c0_i32_0 = arith.constant 0 : i32
    %c0_i32_1 = arith.constant 0 : i32
    return %c0_i32, %c0_i32_0 : i32, i32
  }
  func.func @transform_3(%arg0: i32, %arg1: i32) -> (i32, i32) {
    %c0_i32 = arith.constant 0 : i32
    %c0_i32_0 = arith.constant 0 : i32
    %c0_i32_1 = arith.constant 0 : i32
    return %c0_i32, %c0_i32_0 : i32, i32
  }
  func.func @transform_4(%arg0: i32, %arg1: i32) -> (i32, i32, i32) {
    %c0_i32 = arith.constant 0 : i32
    %c0_i32_0 = arith.constant 0 : i32
    %c0_i32_1 = arith.constant 0 : i32
    return %arg0, %c0_i32, %c0_i32_0 : i32, i32, i32
  }
}

module attributes {stable_mosaic.version = 11 : i64} {
  func.func @_decoder_fat_kernel(%arg0: i32, %arg1: memref<32x128xbf16, #tpu.memory_space<vmem>>, %arg2: memref<64x32xbf16, #tpu.memory_space<vmem>>, %arg3: memref<64x64xbf16, #tpu.memory_space<vmem>>, %arg4: memref<8x64xbf16, #tpu.memory_space<vmem>>, %arg5: memref<3x128xf32, #tpu.memory_space<vmem>>, %arg6: memref<8x128xf32, #tpu.memory_space<vmem>>) attributes {dimension_semantics = [#tpu.dimension_semantics<parallel>], iteration_bounds = array<i64: 4>, scalar_prefetch = 0 : i64, scratch_operands = 0 : i64, tpu.core_type = #tpu.core_type<tc>, window_params = [{transform_indices = @transform_0, window_bounds = array<i64: 32, 128>}, {pipeline_mode = #tpu.pipeline_mode<synchronous>, transform_indices = @transform_1, window_bounds = array<i64: 64, 32>}, {pipeline_mode = #tpu.pipeline_mode<synchronous>, transform_indices = @transform_2, window_bounds = array<i64: 64, 64>}, {pipeline_mode = #tpu.pipeline_mode<synchronous>, transform_indices = @transform_3, window_bounds = array<i64: 8, 64>}, {transform_indices = @transform_4, window_bounds = array<i64: 3, 128>}, {transform_indices = @transform_5, window_bounds = array<i64: 8, 128>}]} {
    %c0 = arith.constant 0 : index
    %c0_0 = arith.constant 0 : index
    %0 = vector.load %arg2[%c0, %c0_0] : memref<64x32xbf16, #tpu.memory_space<vmem>>, vector<64x32xbf16>
    %c0_1 = arith.constant 0 : index
    %c0_2 = arith.constant 0 : index
    %1 = vector.load %arg1[%c0_1, %c0_2] : memref<32x128xbf16, #tpu.memory_space<vmem>>, vector<32x128xbf16>
    %cst = arith.constant dense<0.000000e+00> : vector<64x128xf32>
    %2 = tpu.matmul %0, %1, %cst {dimension_numbers = #tpu.dot_dimension_numbers<[1], [0], [0], [1], [0, 0, 1, 1], [], []>} : vector<64x32xbf16>, vector<32x128xbf16>, vector<64x128xf32> -> vector<64x128xf32>
    %3 = math.tanh %2 : vector<64x128xf32>
    %c0_3 = arith.constant 0 : index
    %c0_4 = arith.constant 0 : index
    %4 = vector.load %arg3[%c0_3, %c0_4] : memref<64x64xbf16, #tpu.memory_space<vmem>>, vector<64x64xbf16>
    %5 = arith.truncf %3 : vector<64x128xf32> to vector<64x128xbf16>
    %cst_5 = arith.constant dense<0.000000e+00> : vector<64x128xf32>
    %6 = tpu.matmul %4, %5, %cst_5 {dimension_numbers = #tpu.dot_dimension_numbers<[1], [0], [0], [1], [0, 0, 1, 1], [], []>} : vector<64x64xbf16>, vector<64x128xbf16>, vector<64x128xf32> -> vector<64x128xf32>
    %7 = math.tanh %6 : vector<64x128xf32>
    %c0_6 = arith.constant 0 : index
    %c0_7 = arith.constant 0 : index
    %8 = vector.load %arg4[%c0_6, %c0_7] : memref<8x64xbf16, #tpu.memory_space<vmem>>, vector<8x64xbf16>
    %9 = arith.truncf %7 : vector<64x128xf32> to vector<64x128xbf16>
    %cst_8 = arith.constant dense<0.000000e+00> : vector<8x128xf32>
    %10 = tpu.matmul %8, %9, %cst_8 {dimension_numbers = #tpu.dot_dimension_numbers<[1], [0], [0], [1], [0, 0, 1, 1], [], []>} : vector<8x64xbf16>, vector<64x128xbf16>, vector<8x128xf32> -> vector<8x128xf32>
    %c0_9 = arith.constant 0 : index
    %c0_10 = arith.constant 0 : index
    %11 = vector.load %arg5[%c0_9, %c0_10] : memref<3x128xf32, #tpu.memory_space<vmem>>, vector<3x128xf32>
    %12 = vector.extract_strided_slice %11 {offsets = [0, 0], sizes = [1, 128], strides = [1, 1]} : vector<3x128xf32> to vector<1x128xf32>
    %13 = vector.broadcast %12 : vector<1x128xf32> to vector<8x128xf32>
    %14 = arith.addf %10, %13 : vector<8x128xf32>
    %cst_11 = arith.constant 0.000000e+00 : f32
    %15 = vector.broadcast %cst_11 : f32 to vector<8x128xf32>
    %16 = arith.maximumf %14, %15 : vector<8x128xf32>
    %17 = vector.extract_strided_slice %11 {offsets = [1, 0], sizes = [1, 128], strides = [1, 1]} : vector<3x128xf32> to vector<1x128xf32>
    %18 = vector.broadcast %17 : vector<1x128xf32> to vector<8x128xf32>
    %19 = arith.mulf %16, %18 : vector<8x128xf32>
    %20 = vector.extract_strided_slice %11 {offsets = [2, 0], sizes = [1, 128], strides = [1, 1]} : vector<3x128xf32> to vector<1x128xf32>
    %21 = vector.broadcast %20 : vector<1x128xf32> to vector<8x128xf32>
    %22 = arith.addf %19, %21 : vector<8x128xf32>
    %23 = arith.negf %22 : vector<8x128xf32>
    %24 = math.exp %23 : vector<8x128xf32>
    %cst_12 = arith.constant 1.000000e+00 : f32
    %25 = vector.broadcast %cst_12 : f32 to vector<8x128xf32>
    %26 = arith.addf %25, %24 : vector<8x128xf32>
    %27 = arith.divf %25, %26 : vector<8x128xf32>
    %c0_13 = arith.constant 0 : index
    %c0_14 = arith.constant 0 : index
    %28 = vector.load %arg6[%c0_13, %c0_14] : memref<8x128xf32, #tpu.memory_space<vmem>>, vector<8x128xf32>
    tpu.vector_store %arg6[%c0_13, %c0_14], %27 {strides = array<i32>} : memref<8x128xf32, #tpu.memory_space<vmem>>, vector<8x128xf32>,
    return
  }
  func.func @transform_0(%arg0: i32) -> (i32, i32) {
    %c0_i32 = arith.constant 0 : i32
    %c0_i32_0 = arith.constant 0 : i32
    return %c0_i32, %arg0 : i32, i32
  }
  func.func @transform_1(%arg0: i32) -> (i32, i32) {
    %c0_i32 = arith.constant 0 : i32
    %c0_i32_0 = arith.constant 0 : i32
    %c0_i32_1 = arith.constant 0 : i32
    return %c0_i32, %c0_i32_0 : i32, i32
  }
  func.func @transform_2(%arg0: i32) -> (i32, i32) {
    %c0_i32 = arith.constant 0 : i32
    %c0_i32_0 = arith.constant 0 : i32
    %c0_i32_1 = arith.constant 0 : i32
    return %c0_i32, %c0_i32_0 : i32, i32
  }
  func.func @transform_3(%arg0: i32) -> (i32, i32) {
    %c0_i32 = arith.constant 0 : i32
    %c0_i32_0 = arith.constant 0 : i32
    %c0_i32_1 = arith.constant 0 : i32
    return %c0_i32, %c0_i32_0 : i32, i32
  }
  func.func @transform_4(%arg0: i32) -> (i32, i32) {
    %c0_i32 = arith.constant 0 : i32
    %c0_i32_0 = arith.constant 0 : i32
    return %c0_i32, %arg0 : i32, i32
  }
  func.func @transform_5(%arg0: i32) -> (i32, i32) {
    %c0_i32 = arith.constant 0 : i32
    %c0_i32_0 = arith.constant 0 : i32
    return %c0_i32, %arg0 : i32, i32
  }
}

</mosaic_0001>

<llo_original>
// kernel: vae_forward.3
$region0: #{vae_forward.3}
  #allocation0 [shape = 'u32[]', space=smem, size = 0x4, offset = 0x4, fixed_abs, tag = 'smem constant byte address 0x4 - core index']
  #allocation1 [shape = 'u32[144,128]{1,0:T(1,128)}', space=vmem, size = 0x12000, scoped, tag = 'internal scratch']
  %s0 = inlined_call_operand.vmem [shape: bf16[32,512], index: 0, kind: input, shape index: {}]
  %s1 = inlined_call_operand.vmem [shape: bf16[64,32], index: 1, kind: input, shape index: {}]
  %s2 = inlined_call_operand.vmem [shape: bf16[64,64], index: 2, kind: input, shape index: {}]
  %s3 = inlined_call_operand.vmem [shape: bf16[8,64], index: 3, kind: input, shape index: {}]
  %s4 = inlined_call_operand.vmem [shape: f32[3,512], index: 4, kind: input, shape index: {}]
  %s5 = inlined_call_operand.hbm [shape: f32[8,512], index: 5, kind: output, shape index: {}]
  %s6 = sld [smem:[#allocation0]]
  $region94: #{vae_forward.3} parent=0
    _
  %s8 = ssub.s32 1, %s6
  %s9 = scalar_select 0, %s8, %s6
  $region1: #{vae_forward.3} parent=0
    #allocation2 [shape = 'u8[16384]{0}', space=vmem, size = 0x4000, scoped, tag = 'input window, operand 0']
    #allocation3 [shape = 'u8[8192]{0}', space=vmem, size = 0x2000, scoped, tag = 'output window, operand 0']
    #allocation4 [shape = 's32[2]{0}', space=sflag, size = 0x8, scoped, tag = 'scoped memory for vae_forward.3']
    %10 = vsyncpa [#allocation4], 0
    %s11 = scalar_lea.sflag [#allocation4], 1
    %12 = vsyncpa %s11, 0
    loop: start=0, step=1, limit=6
    $region2: #{vae_forward.3} parent=1 // loop_pre_header
      _
    $region3: #{vae_forward.3} parent=1 // loop_header
      %s14 = sphi 0, %s18
      %p15 = scmp.ge.s32.totalorder %s14, 6
      %s24 = sphi 0, %s26
      %s27 = sphi 0, %s24
      %s28 = sphi 0, %s27
      %s44 = sphi 0, %s28
      %s48 = sphi 0, %s48
      %s50 = sphi 0, %s48
      %s51 = sphi 0, %s50
      %s65 = sphi 0, %s51
      %s69 = sphi 0, %s69
      %s71 = sphi 0, %s69
      %s72 = sphi 0, %s71
      %s86 = sphi 0, %s72
      %s90 = sphi 0, %s90
      %s92 = sphi 0, %s90
      %s93 = sphi 0, %s92
      %s107 = sphi 0, %s93
      %s113 = sphi 0, %s115
      %s116 = sphi 0, %s113
      %s117 = sphi 0, %s116
      %s133 = sphi 0, %s117
      %s139 = sphi 0, %s141
      %s142 = sphi 0, %s139
      %s143 = sphi 0, %s142
      %s159 = sphi 0, %s143
    $region4: #{vae_forward.3} parent=1 // loop_header_branch
      %17 = sbr.rel (%p15) target = $region8
    $region5: #{vae_forward.3} parent=1 // loop_body
      %s19 = ssub.s32 %s14, 1
      %s20 = ssub.s32 %s14, 2
      %s21 = sadd.s32 %s14, 1
      %s22 = ssub.s32 %s14, %s21
      %p23 = scmp.eq.s32.totalorder %s22, 0
      %s25 = sadd.s32 %s24, 1
      %s26 = scalar_select %p23, %s24, %s25
      %p29 = pneg %p23
      %p30 = scmp.eq.s32.totalorder %s14, 3
      %p31 = por %p29, %p30
      %p32 = scmp.ne.s32.totalorder %s24, %s27
      %p33 = scmp.eq.s32.totalorder %s14, 0
      %p34 = por %p32, %p33
      %p35 = scmp.ne.s32.totalorder %s24, %s27
      %p36 = scmp.eq.s32.totalorder %s19, 3
      %p37 = por %p35, %p36
      %p38 = scmp.ne.s32.totalorder %s27, %s28
      %p39 = scmp.eq.s32.totalorder %s19, 0
      %p40 = por %p38, %p39
      %p41 = scmp.ne.s32.totalorder %s27, %s28
      %p42 = scmp.eq.s32.totalorder %s20, 3
      %p43 = por %p41, %p42
      %p45 = scmp.ne.s32.totalorder %s28, %s44
      %p46 = scmp.eq.s32.totalorder %s20, 0
      %p47 = por %p45, %p46
      %s49 = sadd.s32 %s48, 1
      %p52 = scmp.eq.s32.totalorder %s14, 3
      %p53 = scmp.ne.s32.totalorder %s48, %s50
      %p54 = scmp.eq.s32.totalorder %s14, 0
      %p55 = por %p53, %p54
      %p56 = scmp.ne.s32.totalorder %s48, %s50
      %p57 = scmp.eq.s32.totalorder %s19, 3
      %p58 = por %p56, %p57
      %p59 = scmp.ne.s32.totalorder %s50, %s51
      %p60 = scmp.eq.s32.totalorder %s19, 0
      %p61 = por %p59, %p60
      %p62 = scmp.ne.s32.totalorder %s50, %s51
      %p63 = scmp.eq.s32.totalorder %s20, 3
      %p64 = por %p62, %p63
      %p66 = scmp.ne.s32.totalorder %s51, %s65
      %p67 = scmp.eq.s32.totalorder %s20, 0
      %p68 = por %p66, %p67
      %s70 = sadd.s32 %s69, 1
      %p73 = scmp.eq.s32.totalorder %s14, 3
      %p74 = scmp.ne.s32.totalorder %s69, %s71
      %p75 = scmp.eq.s32.totalorder %s14, 0
      %p76 = por %p74, %p75
      %p77 = scmp.ne.s32.totalorder %s69, %s71
      %p78 = scmp.eq.s32.totalorder %s19, 3
      %p79 = por %p77, %p78
      %p80 = scmp.ne.s32.totalorder %s71, %s72
      %p81 = scmp.eq.s32.totalorder %s19, 0
      %p82 = por %p80, %p81
      %p83 = scmp.ne.s32.totalorder %s71, %s72
      %p84 = scmp.eq.s32.totalorder %s20, 3
      %p85 = por %p83, %p84
      %p87 = scmp.ne.s32.totalorder %s72, %s86
      %p88 = scmp.eq.s32.totalorder %s20, 0
      %p89 = por %p87, %p88
      %s91 = sadd.s32 %s90, 1
      %p94 = scmp.eq.s32.totalorder %s14, 3
      %p95 = scmp.ne.s32.totalorder %s90, %s92
      %p96 = scmp.eq.s32.totalorder %s14, 0
      %p97 = por %p95, %p96
      %p98 = scmp.ne.s32.totalorder %s90, %s92
      %p99 = scmp.eq.s32.totalorder %s19, 3
      %p100 = por %p98, %p99
      %p101 = scmp.ne.s32.totalorder %s92, %s93
      %p102 = scmp.eq.s32.totalorder %s19, 0
      %p103 = por %p101, %p102
      %p104 = scmp.ne.s32.totalorder %s92, %s93
      %p105 = scmp.eq.s32.totalorder %s20, 3
      %p106 = por %p104, %p105
      %p108 = scmp.ne.s32.totalorder %s93, %s107
      %p109 = scmp.eq.s32.totalorder %s20, 0
      %p110 = por %p108, %p109
      %s111 = ssub.s32 %s14, %s21
      %p112 = scmp.eq.s32.totalorder %s111, 0
      %s114 = sadd.s32 %s113, 1
      %s115 = scalar_select %p112, %s113, %s114
      %p118 = pneg %p112
      %p119 = scmp.eq.s32.totalorder %s14, 3
      %p120 = por %p118, %p119
      %p121 = scmp.ne.s32.totalorder %s113, %s116
      %p122 = scmp.eq.s32.totalorder %s14, 0
      %p123 = por %p121, %p122
      %p124 = scmp.ne.s32.totalorder %s113, %s116
      %p125 = scmp.eq.s32.totalorder %s19, 3
      %p126 = por %p124, %p125
      %p127 = scmp.ne.s32.totalorder %s116, %s117
      %p128 = scmp.eq.s32.totalorder %s19, 0
      %p129 = por %p127, %p128
      %p130 = scmp.ne.s32.totalorder %s116, %s117
      %p131 = scmp.eq.s32.totalorder %s20, 3
      %p132 = por %p130, %p131
      %p134 = scmp.ne.s32.totalorder %s117, %s133
      %p135 = scmp.eq.s32.totalorder %s20, 0
      %p136 = por %p134, %p135
      %s137 = ssub.s32 %s14, %s21
      %p138 = scmp.eq.s32.totalorder %s137, 0
      %s140 = sadd.s32 %s139, 1
      %s141 = scalar_select %p138, %s139, %s140
      %p144 = pneg %p138
      %p145 = scmp.eq.s32.totalorder %s14, 3
      %p146 = por %p144, %p145
      %p147 = scmp.ne.s32.totalorder %s139, %s142
      %p148 = scmp.eq.s32.totalorder %s14, 0
      %p149 = por %p147, %p148
      %p150 = scmp.ne.s32.totalorder %s139, %s142
      %p151 = scmp.eq.s32.totalorder %s19, 3
      %p152 = por %p150, %p151
      %p153 = scmp.ne.s32.totalorder %s142, %s143
      %p154 = scmp.eq.s32.totalorder %s19, 0
      %p155 = por %p153, %p154
      %p156 = scmp.ne.s32.totalorder %s142, %s143
      %p157 = scmp.eq.s32.totalorder %s20, 3
      %p158 = por %p156, %p157
      %p160 = scmp.ne.s32.totalorder %s143, %s159
      %p161 = scmp.eq.s32.totalorder %s20, 0
      %p162 = por %p160, %p161
      %p163 = scmp.le.s32.totalorder 1, %s14
      %p164 = scmp.lt.s32.totalorder %s14, 5
      %p165 = pnand %p163, %p164
      %p166 = pneg %p165
      // Predicated region
      $region9: #{vae_forward.3} parent=5 // pred_check
        _
      $region10: #{vae_forward.3} parent=5 // pred_check_branch
        %168 = sbr.rel (%p165) target = $region12
      $region11: #{vae_forward.3} parent=5 // pred_region
        %s169 = ssub.s32 %s14, 1
        // Predicated region
        $region13: #{vae_forward.3} parent=11 // pred_check
          %p170 = pneg %p61
        $region14: #{vae_forward.3} parent=11 // pred_check_branch
          %172 = sbr.rel (%p170) target = $region16
        $region15: #{vae_forward.3} parent=11 // pred_region
          _
        $region16: #{vae_forward.3} parent=11 // pred_fallthru
          _
        // Predicated region
        $region17: #{vae_forward.3} parent=11 // pred_check
          %p173 = pneg %p82
        $region18: #{vae_forward.3} parent=11 // pred_check_branch
          %175 = sbr.rel (%p173) target = $region20
        $region19: #{vae_forward.3} parent=11 // pred_region
          _
        $region20: #{vae_forward.3} parent=11 // pred_fallthru
          _
        // Predicated region
        $region21: #{vae_forward.3} parent=11 // pred_check
          %p176 = pneg %p103
        $region22: #{vae_forward.3} parent=11 // pred_check_branch
          %178 = sbr.rel (%p176) target = $region24
        $region23: #{vae_forward.3} parent=11 // pred_region
          _
        $region24: #{vae_forward.3} parent=11 // pred_fallthru
          _
      $region12: #{vae_forward.3} parent=5 // pred_fallthru
        _
      %p179 = scmp.lt.s32.totalorder %s14, 4
      // Predicated region
      $region25: #{vae_forward.3} parent=5 // pred_check
        %p180 = pneg %p179
      $region26: #{vae_forward.3} parent=5 // pred_check_branch
        %182 = sbr.rel (%p180) target = $region28
      $region27: #{vae_forward.3} parent=5 // pred_region
        // Predicated region
        $region29: #{vae_forward.3} parent=27 // pred_check
          %p183 = pneg %p34
        $region30: #{vae_forward.3} parent=27 // pred_check_branch
          %185 = sbr.rel (%p183) target = $region32
        $region31: #{vae_forward.3} parent=27 // pred_region
          %s186 = sand.u32 %s24, 1
          %s187 = sand.u32 %s24, 1
          %s188 = smul.addr %s187, 16
          %s189 = scalar_lea.vmem [#allocation2], %s188
          %s190 = smul.addr %s14, 4
          %s191 = scalar_lea.vmem %s0, %s190
          // Predicated region
          $region33: #{vae_forward.3} parent=31 // pred_check
            _
          $region34: #{vae_forward.3} parent=31 // pred_check_branch
            %193 = sbr.rel (0) target = $region36
          $region35: #{vae_forward.3} parent=31 // pred_region
            // Predicated region
            $region37: #{vae_forward.3} parent=35 // pred_check
              _
            $region38: #{vae_forward.3} parent=35 // pred_check_branch
              %195 = sbr.rel target = $region40
            $region39: #{vae_forward.3} parent=35 // pred_region
              // Predicated region
              $region52: #{vae_forward.3} parent=39 // pred_check
                _
              $region53: #{vae_forward.3} parent=39 // pred_check_branch
                %216 = sbr.rel (0) target = $region55
              $region54: #{vae_forward.3} parent=39 // pred_region
                loop: start=0, step=1, limit=1
                $region56: #{vae_forward.3} parent=54 // loop_pre_header
                  _
                $region57: #{vae_forward.3} parent=54 // loop_header
                  %s218 = sphi 0, %s222
                  %p219 = scmp.ge.s32.totalorder %s218, 1
                  %s223 = sphi %s191, %s191
                  %s224 = sphi %s189, %s189
                $region58: #{vae_forward.3} parent=54 // loop_header_branch
                  %221 = sbr.rel (%p219) target = $region62
                $region59: #{vae_forward.3} parent=54 // loop_body
                  _
                $region60: #{vae_forward.3} parent=54 // loop_footer
                  %s222 = sadd.s32 1, %s218
                $region61: #{vae_forward.3} parent=54 // loop_footer_branch
                  %217 = sbr.rel target = $region57
                $region62: #{vae_forward.3} parent=54 // loop_exit
                  _
                loop: start=0, step=1, limit=1
                $region63: #{vae_forward.3} parent=54 // loop_pre_header
                  _
                $region64: #{vae_forward.3} parent=54 // loop_header
                  %s227 = sphi 0, %s231
                  %p228 = scmp.ge.s32.totalorder %s227, 1
                  %s232 = sphi %s191, %s191
                  %s233 = sphi %s189, %s189
                $region65: #{vae_forward.3} parent=54 // loop_header_branch
                  %230 = sbr.rel (%p228) target = $region69
                $region66: #{vae_forward.3} parent=54 // loop_body
                  %v234 = vld [vmem:[%s232] sm:$0xf]
                  %235 = vst [vmem:[%s233] sm:$0xf] %v234
                  %v236 = vld [vmem:[%s232 + $0x10] sm:$0xf]
                  %237 = vst [vmem:[%s233 + $0x4] sm:$0xf] %v236
                  %v238 = vld [vmem:[%s232 + $0x20] sm:$0xf]
                  %239 = vst [vmem:[%s233 + $0x8] sm:$0xf] %v238
                  %v240 = vld [vmem:[%s232 + $0x30] sm:$0xf]
                  %241 = vst [vmem:[%s233 + $0xc] sm:$0xf] %v240
                $region67: #{vae_forward.3} parent=54 // loop_footer
                  %s231 = sadd.s32 1, %s227
                $region68: #{vae_forward.3} parent=54 // loop_footer_branch
                  %226 = sbr.rel target = $region64
                $region69: #{vae_forward.3} parent=54 // loop_exit
                  _
              $region55: #{vae_forward.3} parent=39 // pred_fallthru
                _
            $region40: #{vae_forward.3} parent=35 // pred_fallthru
              _
            // Predicated region
            $region41: #{vae_forward.3} parent=35 // pred_check
              _
            $region42: #{vae_forward.3} parent=35 // pred_check_branch
              %197 = sbr.rel (0) target = $region44
            $region43: #{vae_forward.3} parent=35 // pred_region
              loop: start=0, step=1, limit=1
              $region45: #{vae_forward.3} parent=43 // loop_pre_header
                _
              $region46: #{vae_forward.3} parent=43 // loop_header
                %s200 = sphi 0, %s204
                %p201 = scmp.ge.s32.totalorder %s200, 1
                %s205 = sphi %s191, %s191
                %s206 = sphi %s189, %s189
              $region47: #{vae_forward.3} parent=43 // loop_header_branch
                %203 = sbr.rel (%p201) target = $region51
              $region48: #{vae_forward.3} parent=43 // loop_body
                %v207 = vld [vmem:[%s205] sm:$0xf]
                %208 = vst [vmem:[%s206] sm:$0xf] %v207
                %v209 = vld [vmem:[%s205 + $0x10] sm:$0xf]
                %210 = vst [vmem:[%s206 + $0x4] sm:$0xf] %v209
                %v211 = vld [vmem:[%s205 + $0x20] sm:$0xf]
                %212 = vst [vmem:[%s206 + $0x8] sm:$0xf] %v211
                %v213 = vld [vmem:[%s205 + $0x30] sm:$0xf]
                %214 = vst [vmem:[%s206 + $0xc] sm:$0xf] %v213
              $region49: #{vae_forward.3} parent=43 // loop_footer
                %s204 = sadd.s32 1, %s200
              $region50: #{vae_forward.3} parent=43 // loop_footer_branch
                %199 = sbr.rel target = $region46
              $region51: #{vae_forward.3} parent=43 // loop_exit
                _
            $region44: #{vae_forward.3} parent=35 // pred_fallthru
              _
          $region36: #{vae_forward.3} parent=31 // pred_fallthru
            _
          %242 = vnop
        $region32: #{vae_forward.3} parent=27 // pred_fallthru
          _
        // Predicated region
        $region70: #{vae_forward.3} parent=27 // pred_check
          %p243 = pneg %p123
        $region71: #{vae_forward.3} parent=27 // pred_check_branch
          %245 = sbr.rel (%p243) target = $region73
        $region72: #{vae_forward.3} parent=27 // pred_region
          %p246 = scmp.lt.s32.totalorder %s14, 3
          %s247 = scalar_select %p246, %s14, 3
          %s248 = smul.addr %s247, 4
          %s249 = scalar_lea.vmem %s4, %s248
        $region73: #{vae_forward.3} parent=27 // pred_fallthru
          _
      $region28: #{vae_forward.3} parent=5 // pred_fallthru
        _
      %p250 = scmp.le.s32.totalorder 1, %s14
      %p251 = scmp.lt.s32.totalorder %s14, 5
      %p252 = pnand %p250, %p251
      %p253 = pneg %p252
      // Predicated region
      $region74: #{vae_forward.3} parent=5 // pred_check
        _
      $region75: #{vae_forward.3} parent=5 // pred_check_branch
        %255 = sbr.rel (%p252) target = $region77
      $region76: #{vae_forward.3} parent=5 // pred_region
        %s256 = ssub.s32 %s14, 1
        %s257 = sand.u32 %s27, 1
        %s258 = sand.u32 %s27, 1
        %s259 = smul.addr %s258, 16
        %s260 = scalar_lea.vmem [#allocation2], %s259
        // Predicated region
        $region78: #{vae_forward.3} parent=76 // pred_check
          %p261 = pneg %p40
        $region79: #{vae_forward.3} parent=76 // pred_check_branch
          %263 = sbr.rel (%p261) target = $region81
        $region80: #{vae_forward.3} parent=76 // pred_region
          _
        $region81: #{vae_forward.3} parent=76 // pred_fallthru
          _
        %s264 = sand.u32 %s27, 1
        %s265 = sand.u32 %s27, 1
        %s266 = smul.addr %s265, 16
        %s267 = scalar_lea.vmem [#allocation2], %s266
        %p268 = pneg %p40
        %p269 = pneg %p37
        %p270 = pneg %p61
        %p271 = pneg %p58
        %p272 = pneg %p82
        %p273 = pneg %p79
        %p274 = pneg %p103
        %p275 = pneg %p100
        %p276 = scmp.lt.s32.totalorder %s19, 3
        %s277 = scalar_select %p276, %s19, 3
        %s278 = smul.addr %s277, 4
        %s279 = scalar_lea.vmem %s4, %s278
        %p280 = pneg %p129
        %p281 = pneg %p126
        %p282 = pneg %p155
        %p283 = pneg %p152
        %s284 = sand.u32 %s142, 1
        %s285 = scalar_lea.sflag [#allocation4], %s284
        %s286 = sand.u32 %s142, 1
        %s287 = smul.addr %s286, 8
        %s288 = scalar_lea.vmem [#allocation3], %s287
        %p289 = scmp.lt.s32.totalorder %s19, 3
        %s290 = scalar_select %p289, %s19, 3
        %s291 = smul.addr %s290, 4
        %s292 = scalar_lea.vmem %s4, %s291
        %v294 = vld [vmem:[%s1] sm:$0xf]
        %v295 = vld [vmem:[%s1 + $0x4] sm:$0xf]
        %v296 = vld [vmem:[%s1 + $0x8] sm:$0xf]
        %v297 = vld [vmem:[%s1 + $0xc] sm:$0xf]
        %v298 = vld [vmem:[%s1 + $0x10] sm:$0xf]
        %v299 = vld [vmem:[%s1 + $0x14] sm:$0xf]
        %v300 = vld [vmem:[%s1 + $0x18] sm:$0xf]
        %v301 = vld [vmem:[%s1 + $0x1c] sm:$0xf]
        %v302 = vld [vmem:[%s260] sm:$0xf]
        %v303 = vld [vmem:[%s260 + $0x4] sm:$0xf]
        %v304 = vld [vmem:[%s260 + $0x8] sm:$0xf]
        %v305 = vld [vmem:[%s260 + $0xc] sm:$0xf]
        %v314 = vunpack.c.l.b16 %v294
        %v315 = vunpack.c.l.b16 %v295
        %v316 = vunpack.c.l.b16 %v296
        %v317 = vunpack.c.l.b16 %v297
        %v318 = vunpack.c.l.b16 %v298
        %v319 = vunpack.c.l.b16 %v299
        %v320 = vunpack.c.l.b16 %v300
        %v321 = vunpack.c.l.b16 %v301
        %v322 = vpack.c.b16 %v315, %v314
        %v323 = vpack.c.b16 %v317, %v316
        %v324 = vpack.c.b16 %v319, %v318
        %v325 = vpack.c.b16 %v321, %v320
        %v330 = vunpack.c.l.b16 %v302
        %v331 = vunpack.c.l.b16 %v303
        %v332 = vunpack.c.l.b16 %v304
        %v333 = vunpack.c.l.b16 %v305
        %v334 = vpack.c.b16 %v331, %v330
        %v335 = vpack.c.b16 %v333, %v332
        %vm338 = vcmask 261120
        %v340 = vsel %vm338, %v322, 0
        %v343 = vsel %vm338, %v323, 0
        %v346 = vsel %vm338, %v324, 0
        %v349 = vsel %vm338, %v325, 0
        %351 = vmatprep.subr.bf16.mxu0 0
        %352 = vmatpush1.bf16.msra.mxu0 %v334
        %353 = vmatprep.subr.bf16.mxu0 0
        %354 = vmatpush1.bf16.msra.mxu0 %v335
        %355 = vmatprep.subr.bf16.mxu0 0
        %356 = vmatpush1.bf16.msra.mxu0 0
        %357 = vmatprep.subr.bf16.mxu0 0
        %358 = vmatpush1.bf16.msra.mxu0 0
        %359 = vmatprep.subr.bf16.mxu0 0
        %360 = vmatpush1.bf16.msra.mxu0 0
        %361 = vmatprep.subr.bf16.mxu0 0
        %362 = vmatpush1.bf16.msra.mxu0 0
        %363 = vmatprep.subr.bf16.mxu0 0
        %364 = vmatpush1.bf16.msra.mxu0 0
        %365 = vmatprep.subr.bf16.mxu0 0
        %366 = vmatpush1.bf16.msra.mxu0 0
        %367 = vmatprep.subr.bf16.mxu0 0
        %368 = vmatpush1.bf16.msra.mxu0 0
        %369 = vmatprep.subr.bf16.mxu0 0
        %370 = vmatpush1.bf16.msra.mxu0 0
        %371 = vmatprep.subr.bf16.mxu0 0
        %372 = vmatpush1.bf16.msra.mxu0 0
        %373 = vmatprep.subr.bf16.mxu0 0
        %374 = vmatpush1.bf16.msra.mxu0 0
        %375 = vmatprep.subr.bf16.mxu0 0
        %376 = vmatpush1.bf16.msra.mxu0 0
        %377 = vmatprep.subr.bf16.mxu0 0
        %378 = vmatpush1.bf16.msra.mxu0 0
        %379 = vmatprep.subr.bf16.mxu0 0
        %380 = vmatpush1.bf16.msra.mxu0 0
        %381 = vmatprep.subr.bf16.mxu0 0
        %382 = vmatpush1.bf16.msra.mxu0 0
        %383 = vmatprep.mubr.bf16.mxu0 0
        %384 = vmatmul.mubr.bf16.gmra.mrb[0].mxu0 %v340
        %v385 = vpop.f32.mrb[0].mxu0
        %v386 = vadd.f32 0.0, %v385
        %v387 = vpop.f32.mrb[0].mxu0
        %v388 = vpop.f32.mrb[0].mxu0
        %v389 = vadd.f32 0.0, %v388
        %v390 = vpop.f32.mrb[0].mxu0
        %391 = vmatprep.mubr.bf16.mxu0 0
        %392 = vmatmul.mubr.bf16.gmra.mrb[0].mxu0 %v343
        %v393 = vpop.f32.mrb[0].mxu0
        %v394 = vadd.f32 0.0, %v393
        %v395 = vpop.f32.mrb[0].mxu0
        %v396 = vpop.f32.mrb[0].mxu0
        %v397 = vadd.f32 0.0, %v396
        %v398 = vpop.f32.mrb[0].mxu0
        %399 = vmatprep.mubr.bf16.mxu0 0
        %400 = vmatmul.mubr.bf16.gmra.mrb[0].mxu0 %v346
        %v401 = vpop.f32.mrb[0].mxu0
        %v402 = vadd.f32 0.0, %v401
        %v403 = vpop.f32.mrb[0].mxu0
        %v404 = vpop.f32.mrb[0].mxu0
        %v405 = vadd.f32 0.0, %v404
        %v406 = vpop.f32.mrb[0].mxu0
        %407 = vmatprep.mubr.bf16.mxu0 0
        %408 = vmatmul.mubr.bf16.gmra.mrb[0].mxu0 %v349
        %v409 = vpop.f32.mrb[0].mxu0
        %v410 = vadd.f32 0.0, %v409
        %v411 = vpop.f32.mrb[0].mxu0
        %v412 = vpop.f32.mrb[0].mxu0
        %v413 = vadd.f32 0.0, %v412
        %v414 = vpop.f32.mrb[0].mxu0
        %415 = vdwg.mxu0
        %v416 = vtanh.pop %v386
        %v417 = vtanh.pop %v389
        %v418 = vtanh.pop %v394
        %v419 = vtanh.pop %v397
        %v420 = vtanh.pop %v402
        %v421 = vtanh.pop %v405
        %v422 = vtanh.pop %v410
        %v423 = vtanh.pop %v413
        %v424 = vld [vmem:[%s2] sm:$0xf]
        %v425 = vld [vmem:[%s2 + $0x4] sm:$0xf]
        %v426 = vld [vmem:[%s2 + $0x8] sm:$0xf]
        %v427 = vld [vmem:[%s2 + $0xc] sm:$0xf]
        %v428 = vld [vmem:[%s2 + $0x10] sm:$0xf]
        %v429 = vld [vmem:[%s2 + $0x14] sm:$0xf]
        %v430 = vld [vmem:[%s2 + $0x18] sm:$0xf]
        %v431 = vld [vmem:[%s2 + $0x1c] sm:$0xf]
        %v432 = vpack.c.bf16 %v417, %v416
        %v433 = vpack.c.bf16 %v419, %v418
        %v434 = vpack.c.bf16 %v421, %v420
        %v435 = vpack.c.bf16 %v423, %v422
        %v444 = vunpack.c.l.b16 %v424
        %v445 = vunpack.c.l.b16 %v425
        %v446 = vunpack.c.l.b16 %v426
        %v447 = vunpack.c.l.b16 %v427
        %v448 = vunpack.c.l.b16 %v428
        %v449 = vunpack.c.l.b16 %v429
        %v450 = vunpack.c.l.b16 %v430
        %v451 = vunpack.c.l.b16 %v431
        %v452 = vpack.c.b16 %v445, %v444
        %v453 = vpack.c.b16 %v447, %v446
        %v454 = vpack.c.b16 %v449, %v448
        %v455 = vpack.c.b16 %v451, %v450
        %vm456 = vcmask 523264
        %v458 = vsel %vm456, %v452, 0
        %v461 = vsel %vm456, %v453, 0
        %v464 = vsel %vm456, %v454, 0
        %v467 = vsel %vm456, %v455, 0
        %469 = vmatprep.subr.bf16.mxu0 0
        %470 = vmatpush1.bf16.msra.mxu0 %v432
        %471 = vmatprep.subr.bf16.mxu0 0
        %472 = vmatpush1.bf16.msra.mxu0 %v433
        %473 = vmatprep.subr.bf16.mxu0 0
        %474 = vmatpush1.bf16.msra.mxu0 %v434
        %475 = vmatprep.subr.bf16.mxu0 0
        %476 = vmatpush1.bf16.msra.mxu0 %v435
        %477 = vmatprep.subr.bf16.mxu0 0
        %478 = vmatpush1.bf16.msra.mxu0 0
        %479 = vmatprep.subr.bf16.mxu0 0
        %480 = vmatpush1.bf16.msra.mxu0 0
        %481 = vmatprep.subr.bf16.mxu0 0
        %482 = vmatpush1.bf16.msra.mxu0 0
        %483 = vmatprep.subr.bf16.mxu0 0
        %484 = vmatpush1.bf16.msra.mxu0 0
        %485 = vmatprep.subr.bf16.mxu0 0
        %486 = vmatpush1.bf16.msra.mxu0 0
        %487 = vmatprep.subr.bf16.mxu0 0
        %488 = vmatpush1.bf16.msra.mxu0 0
        %489 = vmatprep.subr.bf16.mxu0 0
        %490 = vmatpush1.bf16.msra.mxu0 0
        %491 = vmatprep.subr.bf16.mxu0 0
        %492 = vmatpush1.bf16.msra.mxu0 0
        %493 = vmatprep.subr.bf16.mxu0 0
        %494 = vmatpush1.bf16.msra.mxu0 0
        %495 = vmatprep.subr.bf16.mxu0 0
        %496 = vmatpush1.bf16.msra.mxu0 0
        %497 = vmatprep.subr.bf16.mxu0 0
        %498 = vmatpush1.bf16.msra.mxu0 0
        %499 = vmatprep.subr.bf16.mxu0 0
        %500 = vmatpush1.bf16.msra.mxu0 0
        %501 = vmatprep.mubr.bf16.mxu0 0
        %502 = vmatmul.mubr.bf16.gmra.mrb[0].mxu0 %v458
        %v503 = vpop.f32.mrb[0].mxu0
        %v504 = vadd.f32 0.0, %v503
        %v505 = vpop.f32.mrb[0].mxu0
        %v506 = vpop.f32.mrb[0].mxu0
        %v507 = vadd.f32 0.0, %v506
        %v508 = vpop.f32.mrb[0].mxu0
        %509 = vmatprep.mubr.bf16.mxu0 0
        %510 = vmatmul.mubr.bf16.gmra.mrb[0].mxu0 %v461
        %v511 = vpop.f32.mrb[0].mxu0
        %v512 = vadd.f32 0.0, %v511
        %v513 = vpop.f32.mrb[0].mxu0
        %v514 = vpop.f32.mrb[0].mxu0
        %v515 = vadd.f32 0.0, %v514
        %v516 = vpop.f32.mrb[0].mxu0
        %517 = vmatprep.mubr.bf16.mxu0 0
        %518 = vmatmul.mubr.bf16.gmra.mrb[0].mxu0 %v464
        %v519 = vpop.f32.mrb[0].mxu0
        %v520 = vadd.f32 0.0, %v519
        %v521 = vpop.f32.mrb[0].mxu0
        %v522 = vpop.f32.mrb[0].mxu0
        %v523 = vadd.f32 0.0, %v522
        %v524 = vpop.f32.mrb[0].mxu0
        %525 = vmatprep.mubr.bf16.mxu0 0
        %526 = vmatmul.mubr.bf16.gmra.mrb[0].mxu0 %v467
        %v527 = vpop.f32.mrb[0].mxu0
        %v528 = vadd.f32 0.0, %v527
        %v529 = vpop.f32.mrb[0].mxu0
        %v530 = vpop.f32.mrb[0].mxu0
        %v531 = vadd.f32 0.0, %v530
        %v532 = vpop.f32.mrb[0].mxu0
        %533 = vdwg.mxu0
        %v534 = vtanh.pop %v504
        %v535 = vtanh.pop %v507
        %v536 = vtanh.pop %v512
        %v537 = vtanh.pop %v515
        %v538 = vtanh.pop %v520
        %v539 = vtanh.pop %v523
        %v540 = vtanh.pop %v528
        %v541 = vtanh.pop %v531
        %v542 = vld [vmem:[%s3] sm:$0xf]
        %v543 = vpack.c.bf16 %v535, %v534
        %v544 = vpack.c.bf16 %v537, %v536
        %v545 = vpack.c.bf16 %v539, %v538
        %v546 = vpack.c.bf16 %v541, %v540
        %v547 = vld [vmem:[%s292] sm:$0x7]
        %v548 = vlaneseq
        %v549 = vshrl.u32 %v548, 7
        %v550 = vsub.s32 0, %v549
        %v551 = vrot.slane %v547, %v550
        %v553 = vsel %vm456, %v542, 0
        %555 = vmatprep.subr.bf16.mxu0 0
        %556 = vmatpush1.bf16.msra.mxu0 %v543
        %557 = vmatprep.subr.bf16.mxu0 0
        %558 = vmatpush1.bf16.msra.mxu0 %v544
        %559 = vmatprep.subr.bf16.mxu0 0
        %560 = vmatpush1.bf16.msra.mxu0 %v545
        %561 = vmatprep.subr.bf16.mxu0 0
        %562 = vmatpush1.bf16.msra.mxu0 %v546
        %563 = vmatprep.subr.bf16.mxu0 0
        %564 = vmatpush1.bf16.msra.mxu0 0
        %565 = vmatprep.subr.bf16.mxu0 0
        %566 = vmatpush1.bf16.msra.mxu0 0
        %567 = vmatprep.subr.bf16.mxu0 0
        %568 = vmatpush1.bf16.msra.mxu0 0
        %569 = vmatprep.subr.bf16.mxu0 0
        %570 = vmatpush1.bf16.msra.mxu0 0
        %571 = vmatprep.subr.bf16.mxu0 0
        %572 = vmatpush1.bf16.msra.mxu0 0
        %573 = vmatprep.subr.bf16.mxu0 0
        %574 = vmatpush1.bf16.msra.mxu0 0
        %575 = vmatprep.subr.bf16.mxu0 0
        %576 = vmatpush1.bf16.msra.mxu0 0
        %577 = vmatprep.subr.bf16.mxu0 0
        %578 = vmatpush1.bf16.msra.mxu0 0
        %579 = vmatprep.subr.bf16.mxu0 0
        %580 = vmatpush1.bf16.msra.mxu0 0
        %581 = vmatprep.subr.bf16.mxu0 0
        %582 = vmatpush1.bf16.msra.mxu0 0
        %583 = vmatprep.subr.bf16.mxu0 0
        %584 = vmatpush1.bf16.msra.mxu0 0
        %585 = vmatprep.subr.bf16.mxu0 0
        %586 = vmatpush1.bf16.msra.mxu0 0
        %587 = vmatprep.mubr.bf16.mxu0 0
        %588 = vmatmul.mubr.bf16.gmra.mrb[0].mxu0 %v553
        %v589 = vpop.f32.mrb[0].mxu0
        %v590 = vadd.f32 %v551, %v589
        %v591 = vpop.f32.mrb[0].mxu0
        %v592 = vpop.f32.mrb[0].mxu0
        %v593 = vpop.f32.mrb[0].mxu0
        %594 = vdwg.mxu0
        %v595 = vmax.f32 %v590, 0.0
        %v596 = vlaneseq
        %v597 = vshrl.u32 %v596, 7
        %v598 = vsub.s32 1, %v597
        %v599 = vrot.slane %v547, %v598
        %v600 = vmul.f32 %v595, %v599
        %v601 = vlaneseq
        %v602 = vshrl.u32 %v601, 7
        %v603 = vsub.s32 2, %v602
        %v604 = vrot.slane %v547, %v603
        %v605 = vadd.f32 %v600, %v604
        %v606 = vxor.u32 %v605, 2147483648
        %v607 = vmul.f32 %v606, 1.442695
        %v608 = vpow.pop %v607
        %v609 = vadd.f32 %v608, 1.0
        %v610 = vrcp.pop %v609
        %v611 = vmul.f32 1.0, %v610
        %612 = vst [vmem:[%s288] sm:$0xff] %v611
        %s613 = sand.u32 %s142, 1
        %s614 = scalar_lea.sflag [#allocation4], %s613
        %s615 = sand.u32 %s142, 1
        %s616 = smul.addr %s615, 8
        %s617 = scalar_lea.vmem [#allocation3], %s616
        // Predicated region
        $region82: #{vae_forward.3} parent=76 // pred_check
          %p618 = pneg %p152
        $region83: #{vae_forward.3} parent=76 // pred_check_branch
          %620 = sbr.rel (%p618) target = $region85
        $region84: #{vae_forward.3} parent=76 // pred_region
          %s622 = ssub.s32 128, 128
          %623 = vsyncadd %s614, %s622
          %s624 = smul.addr %s19, 128
          %s625 = scalar_lea.hbm %s5, %s624
          %s627 = sshll.u32 %s617, 4
          %s628 = int_to_ptr.vmem [resolvable:$true] %s627
          %630 = dma.vmem_to_hbm [thread:$0]  %s628, 128, %s625, %s614
        $region85: #{vae_forward.3} parent=76 // pred_fallthru
          _
      $region77: #{vae_forward.3} parent=5 // pred_fallthru
        _
      %p631 = scmp.le.s32.totalorder 2, %s14
      // Predicated region
      $region86: #{vae_forward.3} parent=5 // pred_check
        %p632 = pneg %p631
      $region87: #{vae_forward.3} parent=5 // pred_check_branch
        %634 = sbr.rel (%p632) target = $region89
      $region88: #{vae_forward.3} parent=5 // pred_region
        %s635 = ssub.s32 %s14, 2
        // Predicated region
        $region90: #{vae_forward.3} parent=88 // pred_check
          %p636 = pneg %p158
        $region91: #{vae_forward.3} parent=88 // pred_check_branch
          %638 = sbr.rel (%p636) target = $region93
        $region92: #{vae_forward.3} parent=88 // pred_region
          %s639 = sand.u32 %s143, 1
          %s640 = scalar_lea.sflag [#allocation4], %s639
          %s641 = sand.u32 %s143, 1
          %s642 = smul.addr %s641, 8
          %s643 = scalar_lea.vmem [#allocation3], %s642
          %644 = dma.done %s640, 128
        $region93: #{vae_forward.3} parent=88 // pred_fallthru
          _
      $region89: #{vae_forward.3} parent=5 // pred_fallthru
        _
    $region6: #{vae_forward.3} parent=1 // loop_footer
      %s18 = sadd.s32 1, %s14
    $region7: #{vae_forward.3} parent=1 // loop_footer_branch
      %13 = sbr.rel target = $region3
    $region8: #{vae_forward.3} parent=1 // loop_exit
      _
    %645 = vsyncpa [#allocation4], 1
    %s646 = scalar_lea.sflag [#allocation4], 1
    %647 = vsyncpa %s646, 1

// kernel: vae_forward.2
$region0: #{vae_forward.2}
  #allocation0 [shape = 'u32[]', space=smem, size = 0x4, offset = 0x4, fixed_abs, tag = 'smem constant byte address 0x4 - core index']
  #allocation1 [shape = 'u32[144,128]{1,0:T(1,128)}', space=vmem, size = 0x12000, scoped, tag = 'internal scratch']
  #allocation2 [shape = 'f32[8,64]{1,0:T(8,128)}', space=vmem, size = 0x1000, scoped, tag = 'scratch operand']
  %s0 = inlined_call_operand.vmem [shape: f32[8,512], index: 0, kind: input, shape index: {}]
  %s1 = inlined_call_operand.vmem [shape: f32[512,32], index: 1, kind: input, shape index: {}]
  %s2 = inlined_call_operand.vmem [shape: bf16[32,64], index: 2, kind: input, shape index: {}]
  %s3 = inlined_call_operand.vmem [shape: bf16[64,64], index: 3, kind: input, shape index: {}]
  %s4 = inlined_call_operand.vmem [shape: f32[2,8,64], index: 4, kind: output, shape index: {}]
  %s5 = sld [smem:[#allocation0]]
  $region57: #{vae_forward.2} parent=0
    _
  %s7 = ssub.s32 1, %s5
  %s8 = scalar_select 0, %s7, %s5
  loop: start=0, step=1, limit=6
  $region2: #{vae_forward.2} parent=0 // loop_pre_header
    _
  $region3: #{vae_forward.2} parent=0 // loop_header
    %s10 = sphi 0, %s14
    %p11 = scmp.ge.s32.totalorder %s10, 6
    %s17 = sphi 0, %s29
    %s18 = sphi 0, %s25
    %s19 = sphi 0, %s17
    %s20 = sphi 0, %s18
    %s21 = sphi 0, %s19
    %s22 = sphi 0, %s20
    %s36 = sphi 0, %s38
    %s39 = sphi 0, %s36
    %s40 = sphi 0, %s39
    %s56 = sphi 0, %s40
    %s66 = sphi 0, %s68
    %s69 = sphi 0, %s66
    %s70 = sphi 0, %s69
    %s86 = sphi 0, %s70
    %s90 = sphi 0, %s90
    %s92 = sphi 0, %s90
    %s93 = sphi 0, %s92
    %s107 = sphi 0, %s93
    %s111 = sphi 0, %s111
    %s113 = sphi 0, %s111
    %s114 = sphi 0, %s113
    %s128 = sphi 0, %s114
    %s134 = sphi 0, %s136
    %s137 = sphi 0, %s134
    %s138 = sphi 0, %s137
    %s154 = sphi 0, %s138
  $region4: #{vae_forward.2} parent=0 // loop_header_branch
    %13 = sbr.rel (%p11) target = $region8
  $region5: #{vae_forward.2} parent=0 // loop_body
    %s15 = ssub.s32 %s10, 1
    %s16 = ssub.s32 %s10, 2
    %s23 = sadd.s32 1, %s18
    %p24 = scmp.ge.s32.totalorder %s23, 2
    %s25 = scalar_select %p24, 0, %s23
    %s26 = sadd.s32 1, %s17
    %s27 = scalar_select %p24, %s26, %s17
    %p28 = scmp.ge.s32.totalorder %s27, 2
    %s29 = scalar_select %p28, 0, %s27
    %s30 = smul.u32 %s17, 2
    %s31 = sadd.s32 %s30, %s18
    %s32 = smul.u32 %s29, 2
    %s33 = sadd.s32 %s32, %s25
    %s34 = ssub.s32 %s31, %s33
    %p35 = scmp.eq.s32.totalorder %s34, 0
    %s37 = sadd.s32 %s36, 1
    %s38 = scalar_select %p35, %s36, %s37
    %p41 = pneg %p35
    %p42 = scmp.eq.s32.totalorder %s10, 3
    %p43 = por %p41, %p42
    %p44 = scmp.ne.s32.totalorder %s36, %s39
    %p45 = scmp.eq.s32.totalorder %s10, 0
    %p46 = por %p44, %p45
    %p47 = scmp.ne.s32.totalorder %s36, %s39
    %p48 = scmp.eq.s32.totalorder %s15, 3
    %p49 = por %p47, %p48
    %p50 = scmp.ne.s32.totalorder %s39, %s40
    %p51 = scmp.eq.s32.totalorder %s15, 0
    %p52 = por %p50, %p51
    %p53 = scmp.ne.s32.totalorder %s39, %s40
    %p54 = scmp.eq.s32.totalorder %s16, 3
    %p55 = por %p53, %p54
    %p57 = scmp.ne.s32.totalorder %s40, %s56
    %p58 = scmp.eq.s32.totalorder %s16, 0
    %p59 = por %p57, %p58
    %s60 = smul.u32 %s17, 2
    %s61 = sadd.s32 %s60, %s18
    %s62 = smul.u32 %s29, 2
    %s63 = sadd.s32 %s62, %s25
    %s64 = ssub.s32 %s61, %s63
    %p65 = scmp.eq.s32.totalorder %s64, 0
    %s67 = sadd.s32 %s66, 1
    %s68 = scalar_select %p65, %s66, %s67
    %p71 = pneg %p65
    %p72 = scmp.eq.s32.totalorder %s10, 3
    %p73 = por %p71, %p72
    %p74 = scmp.ne.s32.totalorder %s66, %s69
    %p75 = scmp.eq.s32.totalorder %s10, 0
    %p76 = por %p74, %p75
    %p77 = scmp.ne.s32.totalorder %s66, %s69
    %p78 = scmp.eq.s32.totalorder %s15, 3
    %p79 = por %p77, %p78
    %p80 = scmp.ne.s32.totalorder %s69, %s70
    %p81 = scmp.eq.s32.totalorder %s15, 0
    %p82 = por %p80, %p81
    %p83 = scmp.ne.s32.totalorder %s69, %s70
    %p84 = scmp.eq.s32.totalorder %s16, 3
    %p85 = por %p83, %p84
    %p87 = scmp.ne.s32.totalorder %s70, %s86
    %p88 = scmp.eq.s32.totalorder %s16, 0
    %p89 = por %p87, %p88
    %s91 = sadd.s32 %s90, 1
    %p94 = scmp.eq.s32.totalorder %s10, 3
    %p95 = scmp.ne.s32.totalorder %s90, %s92
    %p96 = scmp.eq.s32.totalorder %s10, 0
    %p97 = por %p95, %p96
    %p98 = scmp.ne.s32.totalorder %s90, %s92
    %p99 = scmp.eq.s32.totalorder %s15, 3
    %p100 = por %p98, %p99
    %p101 = scmp.ne.s32.totalorder %s92, %s93
    %p102 = scmp.eq.s32.totalorder %s15, 0
    %p103 = por %p101, %p102
    %p104 = scmp.ne.s32.totalorder %s92, %s93
    %p105 = scmp.eq.s32.totalorder %s16, 3
    %p106 = por %p104, %p105
    %p108 = scmp.ne.s32.totalorder %s93, %s107
    %p109 = scmp.eq.s32.totalorder %s16, 0
    %p110 = por %p108, %p109
    %s112 = sadd.s32 %s111, 1
    %p115 = scmp.eq.s32.totalorder %s10, 3
    %p116 = scmp.ne.s32.totalorder %s111, %s113
    %p117 = scmp.eq.s32.totalorder %s10, 0
    %p118 = por %p116, %p117
    %p119 = scmp.ne.s32.totalorder %s111, %s113
    %p120 = scmp.eq.s32.totalorder %s15, 3
    %p121 = por %p119, %p120
    %p122 = scmp.ne.s32.totalorder %s113, %s114
    %p123 = scmp.eq.s32.totalorder %s15, 0
    %p124 = por %p122, %p123
    %p125 = scmp.ne.s32.totalorder %s113, %s114
    %p126 = scmp.eq.s32.totalorder %s16, 3
    %p127 = por %p125, %p126
    %p129 = scmp.ne.s32.totalorder %s114, %s128
    %p130 = scmp.eq.s32.totalorder %s16, 0
    %p131 = por %p129, %p130
    %s132 = ssub.s32 %s17, %s29
    %p133 = scmp.eq.s32.totalorder %s132, 0
    %s135 = sadd.s32 %s134, 1
    %s136 = scalar_select %p133, %s134, %s135
    %p139 = pneg %p133
    %p140 = scmp.eq.s32.totalorder %s10, 3
    %p141 = por %p139, %p140
    %p142 = scmp.ne.s32.totalorder %s134, %s137
    %p143 = scmp.eq.s32.totalorder %s10, 0
    %p144 = por %p142, %p143
    %p145 = scmp.ne.s32.totalorder %s134, %s137
    %p146 = scmp.eq.s32.totalorder %s15, 3
    %p147 = por %p145, %p146
    %p148 = scmp.ne.s32.totalorder %s137, %s138
    %p149 = scmp.eq.s32.totalorder %s15, 0
    %p150 = por %p148, %p149
    %p151 = scmp.ne.s32.totalorder %s137, %s138
    %p152 = scmp.eq.s32.totalorder %s16, 3
    %p153 = por %p151, %p152
    %p155 = scmp.ne.s32.totalorder %s138, %s154
    %p156 = scmp.eq.s32.totalorder %s16, 0
    %p157 = por %p155, %p156
    %p158 = scmp.le.s32.totalorder 1, %s10
    %p159 = scmp.lt.s32.totalorder %s10, 5
    %p160 = pnand %p158, %p159
    %p161 = pneg %p160
    // Predicated region
    $region9: #{vae_forward.2} parent=5 // pred_check
      _
    $region10: #{vae_forward.2} parent=5 // pred_check_branch
      %163 = sbr.rel (%p160) target = $region12
    $region11: #{vae_forward.2} parent=5 // pred_region
      %s164 = ssub.s32 %s10, 1
      // Predicated region
      $region13: #{vae_forward.2} parent=11 // pred_check
        %p165 = pneg %p103
      $region14: #{vae_forward.2} parent=11 // pred_check_branch
        %167 = sbr.rel (%p165) target = $region16
      $region15: #{vae_forward.2} parent=11 // pred_region
        _
      $region16: #{vae_forward.2} parent=11 // pred_fallthru
        _
      // Predicated region
      $region17: #{vae_forward.2} parent=11 // pred_check
        %p168 = pneg %p124
      $region18: #{vae_forward.2} parent=11 // pred_check_branch
        %170 = sbr.rel (%p168) target = $region20
      $region19: #{vae_forward.2} parent=11 // pred_region
        _
      $region20: #{vae_forward.2} parent=11 // pred_fallthru
        _
    $region12: #{vae_forward.2} parent=5 // pred_fallthru
      _
    %p171 = scmp.lt.s32.totalorder %s10, 4
    // Predicated region
    $region21: #{vae_forward.2} parent=5 // pred_check
      %p172 = pneg %p171
    $region22: #{vae_forward.2} parent=5 // pred_check_branch
      %174 = sbr.rel (%p172) target = $region24
    $region23: #{vae_forward.2} parent=5 // pred_region
      // Predicated region
      $region25: #{vae_forward.2} parent=23 // pred_check
        %p175 = pneg %p46
      $region26: #{vae_forward.2} parent=23 // pred_check_branch
        %177 = sbr.rel (%p175) target = $region28
      $region27: #{vae_forward.2} parent=23 // pred_region
        %s178 = smul.u32 %s17, 2
        %s179 = sadd.s32 %s178, %s18
        %p180 = scmp.lt.s32.totalorder %s179, 3
        %s181 = scalar_select %p180, %s179, 3
        %s182 = smul.addr %s181, 8
        %s183 = scalar_lea.vmem %s0, %s182
        %s184 = smul.u32 %s17, 2
        %s185 = sadd.s32 %s184, %s18
      $region28: #{vae_forward.2} parent=23 // pred_fallthru
        _
      // Predicated region
      $region29: #{vae_forward.2} parent=23 // pred_check
        %p186 = pneg %p76
      $region30: #{vae_forward.2} parent=23 // pred_check_branch
        %188 = sbr.rel (%p186) target = $region32
      $region31: #{vae_forward.2} parent=23 // pred_region
        %s189 = smul.u32 %s17, 2
        %s190 = sadd.s32 %s189, %s18
        %s191 = smul.u32 16, %s190
        %p192 = scmp.lt.s32.totalorder %s191, 63
        %s193 = scalar_select %p192, %s191, 63
        %s194 = smul.addr %s193, 8
        %s195 = scalar_lea.vmem %s1, %s194
        %s196 = smul.u32 %s17, 2
        %s197 = sadd.s32 %s196, %s18
        %s198 = smul.u32 16, %s197
      $region32: #{vae_forward.2} parent=23 // pred_fallthru
        _
    $region24: #{vae_forward.2} parent=5 // pred_fallthru
      _
    %p199 = scmp.le.s32.totalorder 1, %s10
    %p200 = scmp.lt.s32.totalorder %s10, 5
    %p201 = pnand %p199, %p200
    %p202 = pneg %p201
    // Predicated region
    $region33: #{vae_forward.2} parent=5 // pred_check
      _
    $region34: #{vae_forward.2} parent=5 // pred_check_branch
      %204 = sbr.rel (%p201) target = $region36
    $region35: #{vae_forward.2} parent=5 // pred_region
      %s205 = ssub.s32 %s10, 1
      %s206 = smul.u32 %s19, 2
      %s207 = sadd.s32 %s206, %s20
      %p208 = scmp.lt.s32.totalorder %s207, 3
      %s209 = scalar_select %p208, %s207, 3
      %s210 = smul.addr %s209, 8
      %s211 = scalar_lea.vmem %s0, %s210
      %p212 = pneg %p52
      %p213 = pneg %p49
      %s214 = smul.u32 %s19, 2
      %s215 = sadd.s32 %s214, %s20
      %s216 = smul.u32 16, %s215
      %p217 = scmp.lt.s32.totalorder %s216, 63
      %s218 = scalar_select %p217, %s216, 63
      %s219 = smul.addr %s218, 8
      %s220 = scalar_lea.vmem %s1, %s219
      %p221 = pneg %p82
      %p222 = pneg %p79
      %p223 = pneg %p103
      %p224 = pneg %p100
      %p225 = pneg %p124
      %p226 = pneg %p121
      %p227 = pneg %p150
      %p228 = pneg %p147
      %p229 = scmp.lt.s32.totalorder %s19, 1
      %s230 = scalar_select %p229, %s19, 1
      %s231 = smul.addr %s230, 8
      %s232 = scalar_lea.vmem %s4, %s231
      %s233 = smul.u32 %s19, 2
      %s234 = sadd.s32 %s233, %s20
      %p235 = scmp.lt.s32.totalorder %s234, 3
      %s236 = scalar_select %p235, %s234, 3
      %s237 = smul.addr %s236, 8
      %s238 = scalar_lea.vmem %s0, %s237
      %s239 = smul.u32 %s19, 2
      %s240 = sadd.s32 %s239, %s20
      %s241 = smul.u32 %s19, 2
      %s242 = sadd.s32 %s241, %s20
      %s243 = smul.u32 16, %s242
      %p244 = scmp.lt.s32.totalorder %s243, 63
      %s245 = scalar_select %p244, %s243, 63
      %s246 = smul.addr %s245, 8
      %s247 = scalar_lea.vmem %s1, %s246
      %s248 = smul.u32 %s19, 2
      %s249 = sadd.s32 %s248, %s20
      %s250 = smul.u32 16, %s249
      %p251 = scmp.lt.s32.totalorder %s19, 1
      %s252 = scalar_select %p251, %s19, 1
      %s253 = smul.addr %s252, 8
      %s254 = scalar_lea.vmem %s4, %s253
      %p256 = scmp.eq.s32.totalorder %s20, 0
      // Predicated region
      $region37: #{vae_forward.2} parent=35 // pred_check
        %p257 = pneg %p256
      $region38: #{vae_forward.2} parent=35 // pred_check_branch
        %259 = sbr.rel (%p257) target = $region40
      $region39: #{vae_forward.2} parent=35 // pred_region
        %vm260 = vcmask 523264
        %261 = vst.msk [vmem:[#allocation2] sm:$0xff] %vm260, 0.0
      $region40: #{vae_forward.2} parent=35 // pred_fallthru
        _
      %v262 = vld [vmem:[%s247] sm:$0xff]
      %v263 = vld [vmem:[%s247 + $0x8] sm:$0xff]
      %v264 = vld [vmem:[%s247 + $0x10] sm:$0xff]
      %v265 = vld [vmem:[%s247 + $0x18] sm:$0xff]
      %v266 = vld [vmem:[%s247 + $0x20] sm:$0xff]
      %v267 = vld [vmem:[%s247 + $0x28] sm:$0xff]
      %v268 = vld [vmem:[%s247 + $0x30] sm:$0xff]
      %v269 = vld [vmem:[%s247 + $0x38] sm:$0xff]
      %v270 = vld [vmem:[%s247 + $0x40] sm:$0xff]
      %v271 = vld [vmem:[%s247 + $0x48] sm:$0xff]
      %v272 = vld [vmem:[%s247 + $0x50] sm:$0xff]
      %v273 = vld [vmem:[%s247 + $0x58] sm:$0xff]
      %v274 = vld [vmem:[%s247 + $0x60] sm:$0xff]
      %v275 = vld [vmem:[%s247 + $0x68] sm:$0xff]
      %v276 = vld [vmem:[%s247 + $0x70] sm:$0xff]
      %v277 = vld [vmem:[%s247 + $0x78] sm:$0xff]
      %v278 = vpack.c.bf16 %v263, %v262
      %v279 = vpack.c.bf16 %v265, %v264
      %v280 = vpack.c.bf16 %v267, %v266
      %v281 = vpack.c.bf16 %v269, %v268
      %v282 = vpack.c.bf16 %v271, %v270
      %v283 = vpack.c.bf16 %v273, %v272
      %v284 = vpack.c.bf16 %v275, %v274
      %v285 = vpack.c.bf16 %v277, %v276
      %v286 = vld [vmem:[%s2] sm:$0xf]
      %v287 = vld [vmem:[%s2 + $0x4] sm:$0xf]
      %v288 = vld [vmem:[%s2 + $0x8] sm:$0xf]
      %v289 = vld [vmem:[%s2 + $0xc] sm:$0xf]
      %v294 = vunpack.c.l.b16 %v286
      %v295 = vunpack.c.l.b16 %v287
      %v296 = vunpack.c.l.b16 %v288
      %v297 = vunpack.c.l.b16 %v289
      %v298 = vpack.c.b16 %v295, %v294
      %v299 = vpack.c.b16 %v297, %v296
      %vm302 = vcmask 261120
      %v304 = vsel %vm302, %v278, 0
      %v307 = vsel %vm302, %v279, 0
      %v310 = vsel %vm302, %v280, 0
      %v313 = vsel %vm302, %v281, 0
      %v316 = vsel %vm302, %v282, 0
      %v319 = vsel %vm302, %v283, 0
      %v322 = vsel %vm302, %v284, 0
      %v325 = vsel %vm302, %v285, 0
      %327 = vmatprep.subr.bf16.mxu0 0
      %328 = vmatpush1.bf16.msra.mxu0 %v298
      %329 = vmatprep.subr.bf16.mxu0 0
      %330 = vmatpush1.bf16.msra.mxu0 %v299
      %331 = vmatprep.subr.bf16.mxu0 0
      %332 = vmatpush1.bf16.msra.mxu0 0
      %333 = vmatprep.subr.bf16.mxu0 0
      %334 = vmatpush1.bf16.msra.mxu0 0
      %335 = vmatprep.subr.bf16.mxu0 0
      %336 = vmatpush1.bf16.msra.mxu0 0
      %337 = vmatprep.subr.bf16.mxu0 0
      %338 = vmatpush1.bf16.msra.mxu0 0
      %339 = vmatprep.subr.bf16.mxu0 0
      %340 = vmatpush1.bf16.msra.mxu0 0
      %341 = vmatprep.subr.bf16.mxu0 0
      %342 = vmatpush1.bf16.msra.mxu0 0
      %343 = vmatprep.subr.bf16.mxu0 0
      %344 = vmatpush1.bf16.msra.mxu0 0
      %345 = vmatprep.subr.bf16.mxu0 0
      %346 = vmatpush1.bf16.msra.mxu0 0
      %347 = vmatprep.subr.bf16.mxu0 0
      %348 = vmatpush1.bf16.msra.mxu0 0
      %349 = vmatprep.subr.bf16.mxu0 0
      %350 = vmatpush1.bf16.msra.mxu0 0
      %351 = vmatprep.subr.bf16.mxu0 0
      %352 = vmatpush1.bf16.msra.mxu0 0
      %353 = vmatprep.subr.bf16.mxu0 0
      %354 = vmatpush1.bf16.msra.mxu0 0
      %355 = vmatprep.subr.bf16.mxu0 0
      %356 = vmatpush1.bf16.msra.mxu0 0
      %357 = vmatprep.subr.bf16.mxu0 0
      %358 = vmatpush1.bf16.msra.mxu0 0
      %359 = vmatprep.mubr.bf16.mxu0 0
      %360 = vmatmul.mubr.bf16.gmra.mrb[0].mxu0 %v304
      %v361 = vpop.f32.mrb[0].mxu0
      %v362 = vadd.f32 0.0, %v361
      %v363 = vpop.f32.mrb[0].mxu0
      %v364 = vpop.f32.mrb[0].mxu0
      %v365 = vadd.f32 0.0, %v364
      %v366 = vpop.f32.mrb[0].mxu0
      %367 = vmatprep.mubr.bf16.mxu0 0
      %368 = vmatmul.mubr.bf16.gmra.mrb[0].mxu0 %v307
      %v369 = vpop.f32.mrb[0].mxu0
      %v370 = vadd.f32 0.0, %v369
      %v371 = vpop.f32.mrb[0].mxu0
      %v372 = vpop.f32.mrb[0].mxu0
      %v373 = vadd.f32 0.0, %v372
      %v374 = vpop.f32.mrb[0].mxu0
      %375 = vmatprep.mubr.bf16.mxu0 0
      %376 = vmatmul.mubr.bf16.gmra.mrb[0].mxu0 %v310
      %v377 = vpop.f32.mrb[0].mxu0
      %v378 = vadd.f32 0.0, %v377
      %v379 = vpop.f32.mrb[0].mxu0
      %v380 = vpop.f32.mrb[0].mxu0
      %v381 = vadd.f32 0.0, %v380
      %v382 = vpop.f32.mrb[0].mxu0
      %383 = vmatprep.mubr.bf16.mxu0 0
      %384 = vmatmul.mubr.bf16.gmra.mrb[0].mxu0 %v313
      %v385 = vpop.f32.mrb[0].mxu0
      %v386 = vadd.f32 0.0, %v385
      %v387 = vpop.f32.mrb[0].mxu0
      %v388 = vpop.f32.mrb[0].mxu0
      %v389 = vadd.f32 0.0, %v388
      %v390 = vpop.f32.mrb[0].mxu0
      %391 = vmatprep.mubr.bf16.mxu0 0
      %392 = vmatmul.mubr.bf16.gmra.mrb[0].mxu0 %v316
      %v393 = vpop.f32.mrb[0].mxu0
      %v394 = vadd.f32 0.0, %v393
      %v395 = vpop.f32.mrb[0].mxu0
      %v396 = vpop.f32.mrb[0].mxu0
      %v397 = vadd.f32 0.0, %v396
      %v398 = vpop.f32.mrb[0].mxu0
      %399 = vmatprep.mubr.bf16.mxu0 0
      %400 = vmatmul.mubr.bf16.gmra.mrb[0].mxu0 %v319
      %v401 = vpop.f32.mrb[0].mxu0
      %v402 = vadd.f32 0.0, %v401
      %v403 = vpop.f32.mrb[0].mxu0
      %v404 = vpop.f32.mrb[0].mxu0
      %v405 = vadd.f32 0.0, %v404
      %v406 = vpop.f32.mrb[0].mxu0
      %407 = vmatprep.mubr.bf16.mxu0 0
      %408 = vmatmul.mubr.bf16.gmra.mrb[0].mxu0 %v322
      %v409 = vpop.f32.mrb[0].mxu0
      %v410 = vadd.f32 0.0, %v409
      %v411 = vpop.f32.mrb[0].mxu0
      %v412 = vpop.f32.mrb[0].mxu0
      %v413 = vadd.f32 0.0, %v412
      %v414 = vpop.f32.mrb[0].mxu0
      %415 = vmatprep.mubr.bf16.mxu0 0
      %416 = vmatmul.mubr.bf16.gmra.mrb[0].mxu0 %v325
      %v417 = vpop.f32.mrb[0].mxu0
      %v418 = vadd.f32 0.0, %v417
      %v419 = vpop.f32.mrb[0].mxu0
      %v420 = vpop.f32.mrb[0].mxu0
      %v421 = vadd.f32 0.0, %v420
      %v422 = vpop.f32.mrb[0].mxu0
      %423 = vdwg.mxu0
      %v424 = vtanh.pop %v362
      %v425 = vtanh.pop %v365
      %v426 = vtanh.pop %v370
      %v427 = vtanh.pop %v373
      %v428 = vtanh.pop %v378
      %v429 = vtanh.pop %v381
      %v430 = vtanh.pop %v386
      %v431 = vtanh.pop %v389
      %v432 = vtanh.pop %v394
      %v433 = vtanh.pop %v397
      %v434 = vtanh.pop %v402
      %v435 = vtanh.pop %v405
      %v436 = vtanh.pop %v410
      %v437 = vtanh.pop %v413
      %v438 = vtanh.pop %v418
      %v439 = vtanh.pop %v421
      %v440 = vpack.c.bf16 %v425, %v424
      %v441 = vpack.c.bf16 %v427, %v426
      %v442 = vpack.c.bf16 %v429, %v428
      %v443 = vpack.c.bf16 %v431, %v430
      %v444 = vpack.c.bf16 %v433, %v432
      %v445 = vpack.c.bf16 %v435, %v434
      %v446 = vpack.c.bf16 %v437, %v436
      %v447 = vpack.c.bf16 %v439, %v438
      %v448 = vld [vmem:[%s3] sm:$0xf]
      %v449 = vld [vmem:[%s3 + $0x4] sm:$0xf]
      %v450 = vld [vmem:[%s3 + $0x8] sm:$0xf]
      %v451 = vld [vmem:[%s3 + $0xc] sm:$0xf]
      %v452 = vld [vmem:[%s3 + $0x10] sm:$0xf]
      %v453 = vld [vmem:[%s3 + $0x14] sm:$0xf]
      %v454 = vld [vmem:[%s3 + $0x18] sm:$0xf]
      %v455 = vld [vmem:[%s3 + $0x1c] sm:$0xf]
      %v464 = vunpack.c.l.b16 %v448
      %v465 = vunpack.c.l.b16 %v449
      %v466 = vunpack.c.l.b16 %v450
      %v467 = vunpack.c.l.b16 %v451
      %v468 = vunpack.c.l.b16 %v452
      %v469 = vunpack.c.l.b16 %v453
      %v470 = vunpack.c.l.b16 %v454
      %v471 = vunpack.c.l.b16 %v455
      %v472 = vpack.c.b16 %v465, %v464
      %v473 = vpack.c.b16 %v467, %v466
      %v474 = vpack.c.b16 %v469, %v468
      %v475 = vpack.c.b16 %v471, %v470
      %vm480 = vcmask 523264
      %v482 = vsel %vm480, %v440, 0
      %v485 = vsel %vm480, %v441, 0
      %v488 = vsel %vm480, %v442, 0
      %v491 = vsel %vm480, %v443, 0
      %v494 = vsel %vm480, %v444, 0
      %v497 = vsel %vm480, %v445, 0
      %v500 = vsel %vm480, %v446, 0
      %v503 = vsel %vm480, %v447, 0
      %505 = vmatprep.subr.bf16.mxu0 0
      %506 = vmatpush1.bf16.msra.mxu0 %v472
      %507 = vmatprep.subr.bf16.mxu0 0
      %508 = vmatpush1.bf16.msra.mxu0 %v473
      %509 = vmatprep.subr.bf16.mxu0 0
      %510 = vmatpush1.bf16.msra.mxu0 %v474
      %511 = vmatprep.subr.bf16.mxu0 0
      %512 = vmatpush1.bf16.msra.mxu0 %v475
      %513 = vmatprep.subr.bf16.mxu0 0
      %514 = vmatpush1.bf16.msra.mxu0 0
      %515 = vmatprep.subr.bf16.mxu0 0
      %516 = vmatpush1.bf16.msra.mxu0 0
      %517 = vmatprep.subr.bf16.mxu0 0
      %518 = vmatpush1.bf16.msra.mxu0 0
      %519 = vmatprep.subr.bf16.mxu0 0
      %520 = vmatpush1.bf16.msra.mxu0 0
      %521 = vmatprep.subr.bf16.mxu0 0
      %522 = vmatpush1.bf16.msra.mxu0 0
      %523 = vmatprep.subr.bf16.mxu0 0
      %524 = vmatpush1.bf16.msra.mxu0 0
      %525 = vmatprep.subr.bf16.mxu0 0
      %526 = vmatpush1.bf16.msra.mxu0 0
      %527 = vmatprep.subr.bf16.mxu0 0
      %528 = vmatpush1.bf16.msra.mxu0 0
      %529 = vmatprep.subr.bf16.mxu0 0
      %530 = vmatpush1.bf16.msra.mxu0 0
      %531 = vmatprep.subr.bf16.mxu0 0
      %532 = vmatpush1.bf16.msra.mxu0 0
      %533 = vmatprep.subr.bf16.mxu0 0
      %534 = vmatpush1.bf16.msra.mxu0 0
      %535 = vmatprep.subr.bf16.mxu0 0
      %536 = vmatpush1.bf16.msra.mxu0 0
      %537 = vmatprep.mubr.bf16.mxu0 0
      %538 = vmatmul.mubr.bf16.gmra.mrb[0].mxu0 %v482
      %v539 = vpop.f32.mrb[0].mxu0
      %v540 = vadd.f32 0.0, %v539
      %v541 = vpop.f32.mrb[0].mxu0
      %v542 = vpop.f32.mrb[0].mxu0
      %v543 = vadd.f32 0.0, %v542
      %v544 = vpop.f32.mrb[0].mxu0
      %545 = vmatprep.mubr.bf16.mxu0 0
      %546 = vmatmul.mubr.bf16.gmra.mrb[0].mxu0 %v485
      %v547 = vpop.f32.mrb[0].mxu0
      %v548 = vadd.f32 0.0, %v547
      %v549 = vpop.f32.mrb[0].mxu0
      %v550 = vpop.f32.mrb[0].mxu0
      %v551 = vadd.f32 0.0, %v550
      %v552 = vpop.f32.mrb[0].mxu0
      %553 = vmatprep.mubr.bf16.mxu0 0
      %554 = vmatmul.mubr.bf16.gmra.mrb[0].mxu0 %v488
      %v555 = vpop.f32.mrb[0].mxu0
      %v556 = vadd.f32 0.0, %v555
      %v557 = vpop.f32.mrb[0].mxu0
      %v558 = vpop.f32.mrb[0].mxu0
      %v559 = vadd.f32 0.0, %v558
      %v560 = vpop.f32.mrb[0].mxu0
      %561 = vmatprep.mubr.bf16.mxu0 0
      %562 = vmatmul.mubr.bf16.gmra.mrb[0].mxu0 %v491
      %v563 = vpop.f32.mrb[0].mxu0
      %v564 = vadd.f32 0.0, %v563
      %v565 = vpop.f32.mrb[0].mxu0
      %v566 = vpop.f32.mrb[0].mxu0
      %v567 = vadd.f32 0.0, %v566
      %v568 = vpop.f32.mrb[0].mxu0
      %569 = vmatprep.mubr.bf16.mxu0 0
      %570 = vmatmul.mubr.bf16.gmra.mrb[0].mxu0 %v494
      %v571 = vpop.f32.mrb[0].mxu0
      %v572 = vadd.f32 0.0, %v571
      %v573 = vpop.f32.mrb[0].mxu0
      %v574 = vpop.f32.mrb[0].mxu0
      %v575 = vadd.f32 0.0, %v574
      %v576 = vpop.f32.mrb[0].mxu0
      %577 = vmatprep.mubr.bf16.mxu0 0
      %578 = vmatmul.mubr.bf16.gmra.mrb[0].mxu0 %v497
      %v579 = vpop.f32.mrb[0].mxu0
      %v580 = vadd.f32 0.0, %v579
      %v581 = vpop.f32.mrb[0].mxu0
      %v582 = vpop.f32.mrb[0].mxu0
      %v583 = vadd.f32 0.0, %v582
      %v584 = vpop.f32.mrb[0].mxu0
      %585 = vmatprep.mubr.bf16.mxu0 0
      %586 = vmatmul.mubr.bf16.gmra.mrb[0].mxu0 %v500
      %v587 = vpop.f32.mrb[0].mxu0
      %v588 = vadd.f32 0.0, %v587
      %v589 = vpop.f32.mrb[0].mxu0
      %v590 = vpop.f32.mrb[0].mxu0
      %v591 = vadd.f32 0.0, %v590
      %v592 = vpop.f32.mrb[0].mxu0
      %593 = vmatprep.mubr.bf16.mxu0 0
      %594 = vmatmul.mubr.bf16.gmra.mrb[0].mxu0 %v503
      %v595 = vpop.f32.mrb[0].mxu0
      %v596 = vadd.f32 0.0, %v595
      %v597 = vpop.f32.mrb[0].mxu0
      %v598 = vpop.f32.mrb[0].mxu0
      %v599 = vadd.f32 0.0, %v598
      %v600 = vpop.f32.mrb[0].mxu0
      %601 = vdwg.mxu0
      %v602 = vtanh.pop %v540
      %v603 = vtanh.pop %v543
      %v604 = vtanh.pop %v548
      %v605 = vtanh.pop %v551
      %v606 = vtanh.pop %v556
      %v607 = vtanh.pop %v559
      %v608 = vtanh.pop %v564
      %v609 = vtanh.pop %v567
      %v610 = vtanh.pop %v572
      %v611 = vtanh.pop %v575
      %v612 = vtanh.pop %v580
      %v613 = vtanh.pop %v583
      %v614 = vtanh.pop %v588
      %v615 = vtanh.pop %v591
      %v616 = vtanh.pop %v596
      %v617 = vtanh.pop %v599
      %v618 = vld [vmem:[#allocation2] sm:$0xff]
      %v619 = vld [vmem:[%s238] sm:$0xff]
      %v620 = vpack.c.bf16 %v619, %v619
      %v621 = vpack.c.bf16 %v603, %v602
      %v622 = vpack.c.bf16 %v605, %v604
      %v623 = vpack.c.bf16 %v607, %v606
      %v624 = vpack.c.bf16 %v609, %v608
      %v625 = vpack.c.bf16 %v611, %v610
      %v626 = vpack.c.bf16 %v613, %v612
      %v627 = vpack.c.bf16 %v615, %v614
      %v628 = vpack.c.bf16 %v617, %v616
      %629 = vmatprep.subr.bf16.mxu0 0
      %630 = vmatpush1.bf16.msra.mxu0 %v621
      %631 = vmatprep.subr.bf16.mxu0 0
      %632 = vmatpush1.bf16.msra.mxu0 %v622
      %633 = vmatprep.subr.bf16.mxu0 0
      %634 = vmatpush1.bf16.msra.mxu0 %v623
      %635 = vmatprep.subr.bf16.mxu0 0
      %636 = vmatpush1.bf16.msra.mxu0 %v624
      %637 = vmatprep.subr.bf16.mxu0 0
      %638 = vmatpush1.bf16.msra.mxu0 %v625
      %639 = vmatprep.subr.bf16.mxu0 0
      %640 = vmatpush1.bf16.msra.mxu0 %v626
      %641 = vmatprep.subr.bf16.mxu0 0
      %642 = vmatpush1.bf16.msra.mxu0 %v627
      %643 = vmatprep.subr.bf16.mxu0 0
      %644 = vmatpush1.bf16.msra.mxu0 %v628
      %645 = vmatprep.subr.bf16.mxu0 0
      %646 = vmatpush1.bf16.msra.mxu0 0
      %647 = vmatprep.subr.bf16.mxu0 0
      %648 = vmatpush1.bf16.msra.mxu0 0
      %649 = vmatprep.subr.bf16.mxu0 0
      %650 = vmatpush1.bf16.msra.mxu0 0
      %651 = vmatprep.subr.bf16.mxu0 0
      %652 = vmatpush1.bf16.msra.mxu0 0
      %653 = vmatprep.subr.bf16.mxu0 0
      %654 = vmatpush1.bf16.msra.mxu0 0
      %655 = vmatprep.subr.bf16.mxu0 0
      %656 = vmatpush1.bf16.msra.mxu0 0
      %657 = vmatprep.subr.bf16.mxu0 0
      %658 = vmatpush1.bf16.msra.mxu0 0
      %659 = vmatprep.subr.bf16.mxu0 0
      %660 = vmatpush1.bf16.msra.mxu0 0
      %661 = vmatprep.mubr.bf16.mxu0 0
      %662 = vmatmul.mubr.bf16.gmra.mrb[0].mxu0 %v620
      %v663 = vpop.f32.mrb[0].mxu0
      %v664 = vadd.f32 0.0, %v663
      %v665 = vpop.f32.mrb[0].mxu0
      %v666 = vpop.f32.mrb[0].mxu0
      %v667 = vpop.f32.mrb[0].mxu0
      %668 = vdwg.mxu0
      %v669 = vadd.f32 %v618, %v664
      %670 = vst.msk [vmem:[#allocation2] sm:$0xff] %vm480, %v669
      %p671 = scmp.eq.s32.totalorder %s20, 1
      // Predicated region
      $region41: #{vae_forward.2} parent=35 // pred_check
        %p672 = pneg %p671
      $region42: #{vae_forward.2} parent=35 // pred_check_branch
        %674 = sbr.rel (%p672) target = $region44
      $region43: #{vae_forward.2} parent=35 // pred_region
        %v675 = vld [vmem:[#allocation2] sm:$0xff]
        %676 = vst.msk [vmem:[%s254] sm:$0xff] %vm480, %v675
      $region44: #{vae_forward.2} parent=35 // pred_fallthru
        _
      %p677 = scmp.lt.s32.totalorder %s19, 1
      %s678 = scalar_select %p677, %s19, 1
      %s679 = smul.addr %s678, 8
      %s680 = scalar_lea.vmem %s4, %s679
      // Predicated region
      $region45: #{vae_forward.2} parent=35 // pred_check
        %p681 = pneg %p147
      $region46: #{vae_forward.2} parent=35 // pred_check_branch
        %683 = sbr.rel (%p681) target = $region48
      $region47: #{vae_forward.2} parent=35 // pred_region
        _
      $region48: #{vae_forward.2} parent=35 // pred_fallthru
        _
    $region36: #{vae_forward.2} parent=5 // pred_fallthru
      _
    %p684 = scmp.le.s32.totalorder 2, %s10
    // Predicated region
    $region49: #{vae_forward.2} parent=5 // pred_check
      %p685 = pneg %p684
    $region50: #{vae_forward.2} parent=5 // pred_check_branch
      %687 = sbr.rel (%p685) target = $region52
    $region51: #{vae_forward.2} parent=5 // pred_region
      %s688 = ssub.s32 %s10, 2
      // Predicated region
      $region53: #{vae_forward.2} parent=51 // pred_check
        %p689 = pneg %p153
      $region54: #{vae_forward.2} parent=51 // pred_check_branch
        %691 = sbr.rel (%p689) target = $region56
      $region55: #{vae_forward.2} parent=51 // pred_region
        %p692 = scmp.lt.s32.totalorder %s21, 1
        %s693 = scalar_select %p692, %s21, 1
        %s694 = smul.addr %s693, 8
        %s695 = scalar_lea.vmem %s4, %s694
      $region56: #{vae_forward.2} parent=51 // pred_fallthru
        _
    $region52: #{vae_forward.2} parent=5 // pred_fallthru
      _
  $region6: #{vae_forward.2} parent=0 // loop_footer
    %s14 = sadd.s32 1, %s10
  $region7: #{vae_forward.2} parent=0 // loop_footer_branch
    %9 = sbr.rel target = $region3
  $region8: #{vae_forward.2} parent=0 // loop_exit
    _

</llo_original>
